<compile_context>
chip_gen: v7x
topology: tpu7x:2x2x1
jax: 0.10.0
libtpu: 0.0.40
codegen_flags: <defaults>
</compile_context>

<pallas_src>
import math
import functools

import jax
import jax.numpy as jnp
from jax import lax
from jax.experimental import pallas as pl
from jax.experimental.pallas import tpu as pltpu


def _round_up(x, m):
    return ((x + m - 1) // m) * m


def _cdiv(a, b):
    return -(-a // b)


def multivae_kernel(x_ref, eps_ref,
                    we1_ref, be1_ref,
                    wml_ref, bml_ref,
                    wd1_ref, bd1_ref,
                    wd2_ref, bd2_ref,
                    logits_ref, packed_ref,
                    *, latent):
    x = x_ref[...]                                   # bf16 tile, fed straight to the MXU
    eps = eps_ref[...].astype(jnp.float32)

    # F.normalize(x, p=2, dim=1, eps=1e-12) scale, folded through the first matmul:
    #   (x * s) @ W == (x @ W) * s  for per-row scalar s.
    xf = x.astype(jnp.float32)
    ss = jnp.sum(xf * xf, axis=-1, keepdims=True)
    inv_norm = lax.rsqrt(jnp.maximum(ss, 1e-24))     # EUP slot

    # TODO(synk): F.dropout(p=0.5) from the reference Encoder is skipped (eval-mode
    # forward); training parity would use pltpu.stateful_bernoulli.

    # Encoder hidden layer + tanh (scale applied on the narrow post-matmul tensor)
    xw = jnp.dot(x, we1_ref[...], preferred_element_type=jnp.float32)
    h = jnp.tanh(xw * inv_norm + be1_ref[...])

    # Fused mu|logvar head (reference uses one Linear(hidden, 2*latent))
    ml = jnp.dot(h.astype(jnp.bfloat16), wml_ref[...],
                 preferred_element_type=jnp.float32) + bml_ref[...]
    mu = ml[:, :latent]
    logvar = ml[:, latent:]

    # Reparameterization: z = mu + eps * exp(0.5 * logvar)   (f32 throughout)
    z = mu + eps * jnp.exp(0.5 * logvar)

    # Decoder
    d = jnp.tanh(jnp.dot(z.astype(jnp.bfloat16), wd1_ref[...],
                         preferred_element_type=jnp.float32) + bd1_ref[...])
    logits = jnp.dot(d.astype(jnp.bfloat16), wd2_ref[...],
                     preferred_element_type=jnp.float32) + bd2_ref[...]

    logits_ref[...] = logits.astype(logits_ref.dtype)
    # Lane-dense packed small outputs: [ mu | logvar | z | pad ]  (4*latent = 128 lanes)
    packed_ref[...] = jnp.concatenate(
        [ml, z, jnp.zeros_like(z)], axis=-1).astype(packed_ref.dtype)


def multivae_forward(x, eps, params, *, tile_b=1024, io_dtype=jnp.bfloat16):
    """Fused MultiVAE forward.

    x:   [B, n_items]  (implicit-feedback counts; streamed to the kernel in io_dtype)
    eps: [B, latent]   f32 reparameterization noise (kept f32 for caller parity)
    params: dict of transposed weights / biases (see init_params; weights are cast
            to bf16 for the MXU, biases stay f32).
    Returns (logits, mu, logvar, z) in io_dtype.
    """
    B, n_items = x.shape
    latent = eps.shape[1]
    hidden = params["we1"].shape[1]
    assert params["wml"].shape == (hidden, 2 * latent)

    # ---- dtype plumbing: narrow HBM streams, bf16 MXU weights, f32 biases --------
    x_io = x.astype(io_dtype)
    eps = eps.astype(jnp.float32)
    we1 = params["we1"].astype(jnp.bfloat16)
    wml = params["wml"].astype(jnp.bfloat16)
    wd1 = params["wd1"].astype(jnp.bfloat16)
    wd2 = params["wd2"].astype(jnp.bfloat16)
    be1 = params["be1"].astype(jnp.float32)
    bml = params["bml"].astype(jnp.float32)
    bd1 = params["bd1"].astype(jnp.float32)
    bd2 = params["bd2"].astype(jnp.float32)

    # ---- batch tiling: multiples of 128; >=2 grid steps when free (v7x megacore) --
    b128 = _round_up(B, 128)
    tile_b = min(_round_up(tile_b, 128), b128)
    n_steps = _cdiv(b128, tile_b)
    if n_steps < 2 and b128 % 256 == 0:
        n_steps = 2                                  # split across the two v7x TCs
    tile_b = _round_up(_cdiv(b128, n_steps), 128)    # re-balance -> minimal padding
    b_pad = tile_b * n_steps
    if b_pad != B:
        x_io = jnp.pad(x_io, ((0, b_pad - B), (0, 0)))
        eps = jnp.pad(eps, ((0, b_pad - B), (0, 0)))

    grid = (n_steps,)
    packed_w = 4 * latent                            # mu | logvar | z | pad (128 lanes)

    batch_map = lambda i: (i, 0)                     # per-tile activations / outputs
    const_map = lambda i: (0, 0)                     # weights resident across the grid

    in_specs = [
        pl.BlockSpec((tile_b, n_items), batch_map),  # x
        pl.BlockSpec((tile_b, latent), batch_map),   # eps
        pl.BlockSpec(we1.shape, const_map),
        pl.BlockSpec(be1.shape, const_map),
        pl.BlockSpec(wml.shape, const_map),
        pl.BlockSpec(bml.shape, const_map),
        pl.BlockSpec(wd1.shape, const_map),
        pl.BlockSpec(bd1.shape, const_map),
        pl.BlockSpec(wd2.shape, const_map),
        pl.BlockSpec(bd2.shape, const_map),
    ]
    out_specs = (
        pl.BlockSpec((tile_b, n_items), batch_map),  # logits
        pl.BlockSpec((tile_b, packed_w), batch_map), # packed mu|logvar|z
    )
    out_shapes = (
        jax.ShapeDtypeStruct((b_pad, n_items), io_dtype),
        jax.ShapeDtypeStruct((b_pad, packed_w), io_dtype),
    )

    io_sz = jnp.dtype(io_dtype).itemsize
    weights = (we1, be1, wml, bml, wd1, bd1, wd2, bd2)
    weight_bytes = sum(int(v.size) * v.dtype.itemsize for v in weights)
    flops = 2 * b_pad * (n_items * hidden + hidden * 2 * latent
                         + latent * hidden + hidden * n_items)
    transcendentals = b_pad * (2 * hidden + latent + 1)      # tanh x2 + exp + rsqrt
    bytes_accessed = (b_pad * (n_items * io_sz + latent * 4)         # inputs
                      + b_pad * (n_items + packed_w) * io_sz         # outputs
                      + weight_bytes)

    # Explicit VMEM budget: double-buffered I/O tiles + resident weights + f32 temps.
    tile_io = tile_b * (2 * n_items * io_sz + latent * 4 + packed_w * io_sz)
    f32_tmp = tile_b * (2 * n_items + 2 * hidden + 4 * latent) * 4
    vmem_limit = int(min(64 * 1024 * 1024,
                         max(32 * 1024 * 1024,
                             2 * tile_io + weight_bytes + 2 * f32_tmp)))

    logits, packed = pl.pallas_call(
        functools.partial(multivae_kernel, latent=latent),
        out_shape=out_shapes,
        grid=grid,
        in_specs=in_specs,
        out_specs=out_specs,
        compiler_params=pltpu.CompilerParams(
            dimension_semantics=("parallel",),
            vmem_limit_bytes=vmem_limit),
        cost_estimate=pl.CostEstimate(
            flops=flops,
            transcendentals=transcendentals,
            bytes_accessed=bytes_accessed),
    )(x_io, eps, we1, be1, wml, bml, wd1, bd1, wd2, bd2)

    mu = packed[:B, 0:latent]
    logvar = packed[:B, latent:2 * latent]
    z = packed[:B, 2 * latent:3 * latent]
    return logits[:B], mu, logvar, z


def init_params(key, n_items, latent, hidden):
    """PyTorch-Linear-style init (uniform +/- 1/sqrt(fan_in)).

    Weights stored already transposed to [in, out]; biases as [1, out].  The
    mu/logvar head is a single fused Linear(hidden, 2*latent), exactly as in the
    reference Mult-VAE encoder."""
    def linear(k, d_in, d_out):
        k_w, k_b = jax.random.split(k)
        bound = 1.0 / math.sqrt(d_in)
        w = jax.random.uniform(k_w, (d_in, d_out), jnp.float32, -bound, bound)
        b = jax.random.uniform(k_b, (1, d_out), jnp.float32, -bound, bound)
        return w, b

    ks = jax.random.split(key, 4)
    we1, be1 = linear(ks[0], n_items, hidden)       # encoder layer 1: n_items -> hidden
    wml, bml = linear(ks[1], hidden, 2 * latent)    # fused encoder head -> mu|logvar
    wd1, bd1 = linear(ks[2], latent, hidden)        # decoder layer 1: latent -> hidden
    wd2, bd2 = linear(ks[3], hidden, n_items)       # decoder layer 2: hidden -> n_items
    return dict(we1=we1, be1=be1, wml=wml, bml=bml,
                wd1=wd1, bd1=bd1, wd2=wd2, bd2=bd2)


def multivae_reference(x, eps, params):
    """Pure-JAX reference (f32 math on the same bf16-rounded weights / input)."""
    latent = eps.shape[1]
    f32 = jnp.float32
    xb = x.astype(jnp.bfloat16).astype(f32)          # match the kernel's I/O rounding
    w = lambda k: params[k].astype(jnp.bfloat16).astype(f32)
    ss = jnp.sum(xb * xb, axis=-1, keepdims=True)
    h = xb * lax.rsqrt(jnp.maximum(ss, 1e-24))
    h = jnp.tanh(h @ w("we1") + params["be1"])
    ml = h @ w("wml") + params["bml"]
    mu, logvar = ml[:, :latent], ml[:, latent:]
    z = mu + eps.astype(f32) * jnp.exp(0.5 * logvar)
    d = jnp.tanh(z @ w("wd1") + params["bd1"])
    logits = d @ w("wd2") + params["bd2"]
    return logits, mu, logvar, z


if __name__ == "__main__":
    # Small config: n_items=256, latent_size=32, num_layers=2 -> p_dims=[32,64,256]
    n_items = 256
    latent = 32
    hidden = 64
    batch = 8

    key = jax.random.PRNGKey(0)
    k_x, k_eps, k_p = jax.random.split(key, 3)

    # Implicit-feedback style input (non-negative 0/1 counts), float32
    x = (jax.random.uniform(k_x, (batch, n_items), jnp.float32) > 0.8).astype(jnp.float32)
    eps = jax.random.normal(k_eps, (batch, latent), jnp.float32)
    params = init_params(k_p, n_items, latent, hidden)

    logits, mu, logvar, z = multivae_forward(x, eps, params)
    jax.block_until_ready((logits, mu, logvar, z))

    assert logits.shape == (batch, n_items)
    assert mu.shape == (batch, latent)
    assert logvar.shape == (batch, latent)
    assert z.shape == (batch, latent)
    assert bool(jnp.all(jnp.isfinite(logits.astype(jnp.float32))))

    # Numeric sanity vs the pure-JAX reference (bf16 MXU operands + bf16 I/O rounding).
    r_logits, r_mu, r_logvar, r_z = multivae_reference(x, eps, params)

    def _maxdiff(a, b):
        return float(jnp.max(jnp.abs(a.astype(jnp.float32) - b.astype(jnp.float32))))

    err = max(_maxdiff(logits, r_logits), _maxdiff(mu, r_mu),
              _maxdiff(logvar, r_logvar), _maxdiff(z, r_z))
    assert err < 0.1, f"max abs error vs reference too large: {err}"

    print("KERNEL_OK")
</pallas_src>

<mosaic_0001>
module attributes {stable_mosaic.version = 11 : i64} {
  func.func @multivae_kernel(%arg0: i32, %arg1: memref<128x256xbf16, #tpu.memory_space<vmem>>, %arg2: memref<128x32xf32, #tpu.memory_space<vmem>>, %arg3: memref<256x64xbf16, #tpu.memory_space<vmem>>, %arg4: memref<1x64xf32, #tpu.memory_space<vmem>>, %arg5: memref<64x64xbf16, #tpu.memory_space<vmem>>, %arg6: memref<1x64xf32, #tpu.memory_space<vmem>>, %arg7: memref<32x64xbf16, #tpu.memory_space<vmem>>, %arg8: memref<1x64xf32, #tpu.memory_space<vmem>>, %arg9: memref<64x256xbf16, #tpu.memory_space<vmem>>, %arg10: memref<1x256xf32, #tpu.memory_space<vmem>>, %arg11: memref<128x256xbf16, #tpu.memory_space<vmem>>, %arg12: memref<128x128xbf16, #tpu.memory_space<vmem>>) attributes {dimension_semantics = [#tpu.dimension_semantics<parallel>], iteration_bounds = array<i64: 1>, scalar_prefetch = 0 : i64, scratch_operands = 0 : i64, tpu.core_type = #tpu.core_type<tc>, window_params = [{transform_indices = @transform_0, window_bounds = array<i64: 128, 256>}, {transform_indices = @transform_1, window_bounds = array<i64: 128, 32>}, {pipeline_mode = #tpu.pipeline_mode<synchronous>, transform_indices = @transform_2, window_bounds = array<i64: 256, 64>}, {pipeline_mode = #tpu.pipeline_mode<synchronous>, transform_indices = @transform_3, window_bounds = array<i64: 1, 64>}, {pipeline_mode = #tpu.pipeline_mode<synchronous>, transform_indices = @transform_4, window_bounds = array<i64: 64, 64>}, {pipeline_mode = #tpu.pipeline_mode<synchronous>, transform_indices = @transform_5, window_bounds = array<i64: 1, 64>}, {pipeline_mode = #tpu.pipeline_mode<synchronous>, transform_indices = @transform_6, window_bounds = array<i64: 32, 64>}, {pipeline_mode = #tpu.pipeline_mode<synchronous>, transform_indices = @transform_7, window_bounds = array<i64: 1, 64>}, {pipeline_mode = #tpu.pipeline_mode<synchronous>, transform_indices = @transform_8, window_bounds = array<i64: 64, 256>}, {pipeline_mode = #tpu.pipeline_mode<synchronous>, transform_indices = @transform_9, window_bounds = array<i64: 1, 256>}, {transform_indices = @transform_10, window_bounds = array<i64: 128, 256>}, {transform_indices = @transform_11, window_bounds = array<i64: 128, 128>}]} {
    %c0 = arith.constant 0 : index
    %c0_0 = arith.constant 0 : index
    %0 = vector.load %arg1[%c0, %c0_0] : memref<128x256xbf16, #tpu.memory_space<vmem>>, vector<128x256xbf16>
    %c0_1 = arith.constant 0 : index
    %c0_2 = arith.constant 0 : index
    %1 = vector.load %arg2[%c0_1, %c0_2] : memref<128x32xf32, #tpu.memory_space<vmem>>, vector<128x32xf32>
    %2 = arith.extf %0 : vector<128x256xbf16> to vector<128x256xf32>
    %3 = arith.mulf %2, %2 : vector<128x256xf32>
    %cst = arith.constant dense<0.000000e+00> : vector<128xf32>
    %4 = vector.multi_reduction <add>, %3, %cst [1] : vector<128x256xf32> to vector<128xf32>
    %5 = vector.shape_cast %4 : vector<128xf32> to vector<128x1xf32>
    %cst_3 = arith.constant 1.000000e-24 : f32
    %6 = vector.broadcast %cst_3 : f32 to vector<128x1xf32>
    %7 = arith.maximumf %5, %6 : vector<128x1xf32>
    %8 = math.rsqrt %7 : vector<128x1xf32>
    %c0_4 = arith.constant 0 : index
    %c0_5 = arith.constant 0 : index
    %9 = vector.load %arg3[%c0_4, %c0_5] : memref<256x64xbf16, #tpu.memory_space<vmem>>, vector<256x64xbf16>
    %cst_6 = arith.constant dense<0.000000e+00> : vector<128x64xf32>
    %10 = tpu.matmul %0, %9, %cst_6 {dimension_numbers = #tpu.dot_dimension_numbers<[1], [0], [0], [1], [0, 0, 1, 1], [], []>} : vector<128x256xbf16>, vector<256x64xbf16>, vector<128x64xf32> -> vector<128x64xf32>
    %11 = vector.broadcast %8 : vector<128x1xf32> to vector<128x64xf32>
    %12 = arith.mulf %10, %11 : vector<128x64xf32>
    %c0_7 = arith.constant 0 : index
    %c0_8 = arith.constant 0 : index
    %13 = vector.load %arg4[%c0_7, %c0_8] : memref<1x64xf32, #tpu.memory_space<vmem>>, vector<1x64xf32>
    %14 = vector.broadcast %13 : vector<1x64xf32> to vector<128x64xf32>
    %15 = arith.addf %12, %14 : vector<128x64xf32>
    %16 = math.tanh %15 : vector<128x64xf32>
    %17 = arith.truncf %16 : vector<128x64xf32> to vector<128x64xbf16>
    %c0_9 = arith.constant 0 : index
    %c0_10 = arith.constant 0 : index
    %18 = vector.load %arg5[%c0_9, %c0_10] : memref<64x64xbf16, #tpu.memory_space<vmem>>, vector<64x64xbf16>
    %cst_11 = arith.constant dense<0.000000e+00> : vector<128x64xf32>
    %19 = tpu.matmul %17, %18, %cst_11 {dimension_numbers = #tpu.dot_dimension_numbers<[1], [0], [0], [1], [0, 0, 1, 1], [], []>} : vector<128x64xbf16>, vector<64x64xbf16>, vector<128x64xf32> -> vector<128x64xf32>
    %c0_12 = arith.constant 0 : index
    %c0_13 = arith.constant 0 : index
    %20 = vector.load %arg6[%c0_12, %c0_13] : memref<1x64xf32, #tpu.memory_space<vmem>>, vector<1x64xf32>
    %21 = vector.broadcast %20 : vector<1x64xf32> to vector<128x64xf32>
    %22 = arith.addf %19, %21 : vector<128x64xf32>
    %23 = vector.extract_strided_slice %22 {offsets = [0, 0], sizes = [128, 32], strides = [1, 1]} : vector<128x64xf32> to vector<128x32xf32>
    %24 = vector.extract_strided_slice %22 {offsets = [0, 32], sizes = [128, 32], strides = [1, 1]} : vector<128x64xf32> to vector<128x32xf32>
    %cst_14 = arith.constant 5.000000e-01 : f32
    %25 = vector.broadcast %cst_14 : f32 to vector<128x32xf32>
    %26 = arith.mulf %25, %24 : vector<128x32xf32>
    %27 = math.exp %26 : vector<128x32xf32>
    %28 = arith.mulf %1, %27 : vector<128x32xf32>
    %29 = arith.addf %23, %28 : vector<128x32xf32>
    %30 = arith.truncf %29 : vector<128x32xf32> to vector<128x32xbf16>
    %c0_15 = arith.constant 0 : index
    %c0_16 = arith.constant 0 : index
    %31 = vector.load %arg7[%c0_15, %c0_16] : memref<32x64xbf16, #tpu.memory_space<vmem>>, vector<32x64xbf16>
    %cst_17 = arith.constant dense<0.000000e+00> : vector<128x64xf32>
    %32 = tpu.matmul %30, %31, %cst_17 {dimension_numbers = #tpu.dot_dimension_numbers<[1], [0], [0], [1], [0, 0, 1, 1], [], []>} : vector<128x32xbf16>, vector<32x64xbf16>, vector<128x64xf32> -> vector<128x64xf32>
    %c0_18 = arith.constant 0 : index
    %c0_19 = arith.constant 0 : index
    %33 = vector.load %arg8[%c0_18, %c0_19] : memref<1x64xf32, #tpu.memory_space<vmem>>, vector<1x64xf32>
    %34 = vector.broadcast %33 : vector<1x64xf32> to vector<128x64xf32>
    %35 = arith.addf %32, %34 : vector<128x64xf32>
    %36 = math.tanh %35 : vector<128x64xf32>
    %37 = arith.truncf %36 : vector<128x64xf32> to vector<128x64xbf16>
    %c0_20 = arith.constant 0 : index
    %c0_21 = arith.constant 0 : index
    %38 = vector.load %arg9[%c0_20, %c0_21] : memref<64x256xbf16, #tpu.memory_space<vmem>>, vector<64x256xbf16>
    %cst_22 = arith.constant dense<0.000000e+00> : vector<128x256xf32>
    %39 = tpu.matmul %37, %38, %cst_22 {dimension_numbers = #tpu.dot_dimension_numbers<[1], [0], [0], [1], [0, 0, 1, 1], [], []>} : vector<128x64xbf16>, vector<64x256xbf16>, vector<128x256xf32> -> vector<128x256xf32>
    %c0_23 = arith.constant 0 : index
    %c0_24 = arith.constant 0 : index
    %40 = vector.load %arg10[%c0_23, %c0_24] : memref<1x256xf32, #tpu.memory_space<vmem>>, vector<1x256xf32>
    %41 = vector.broadcast %40 : vector<1x256xf32> to vector<128x256xf32>
    %42 = arith.addf %39, %41 : vector<128x256xf32>
    %43 = arith.truncf %42 : vector<128x256xf32> to vector<128x256xbf16>
    %c0_25 = arith.constant 0 : index
    %c0_26 = arith.constant 0 : index
    %44 = vector.load %arg11[%c0_25, %c0_26] : memref<128x256xbf16, #tpu.memory_space<vmem>>, vector<128x256xbf16>
    tpu.vector_store %arg11[%c0_25, %c0_26], %43 {strides = array<i32>} : memref<128x256xbf16, #tpu.memory_space<vmem>>, vector<128x256xbf16>,
    %cst_27 = arith.constant 0.000000e+00 : f32
    %45 = vector.broadcast %cst_27 : f32 to vector<128x32xf32>
    %46 = tpu.concatenate %22, %29, %45 in 1 : vector<128x64xf32>, vector<128x32xf32>, vector<128x32xf32> -> vector<128x128xf32>
    %47 = arith.truncf %46 : vector<128x128xf32> to vector<128x128xbf16>
    %c0_28 = arith.constant 0 : index
    %c0_29 = arith.constant 0 : index
    %48 = vector.load %arg12[%c0_28, %c0_29] : memref<128x128xbf16, #tpu.memory_space<vmem>>, vector<128x128xbf16>
    tpu.vector_store %arg12[%c0_28, %c0_29], %47 {strides = array<i32>} : memref<128x128xbf16, #tpu.memory_space<vmem>>, vector<128x128xbf16>,
    return
  }
  func.func @transform_0(%arg0: i32) -> (i32, i32) {
    %c0_i32 = arith.constant 0 : i32
    %c0_i32_0 = arith.constant 0 : i32
    return %arg0, %c0_i32 : i32, i32
  }
  func.func @transform_1(%arg0: i32) -> (i32, i32) {
    %c0_i32 = arith.constant 0 : i32
    %c0_i32_0 = arith.constant 0 : i32
    return %arg0, %c0_i32 : i32, i32
  }
  func.func @transform_2(%arg0: i32) -> (i32, i32) {
    %c0_i32 = arith.constant 0 : i32
    %c0_i32_0 = arith.constant 0 : i32
    %c0_i32_1 = arith.constant 0 : i32
    return %c0_i32, %c0_i32_0 : i32, i32
  }
  func.func @transform_3(%arg0: i32) -> (i32, i32) {
    %c0_i32 = arith.constant 0 : i32
    %c0_i32_0 = arith.constant 0 : i32
    %c0_i32_1 = arith.constant 0 : i32
    return %c0_i32, %c0_i32_0 : i32, i32
  }
  func.func @transform_4(%arg0: i32) -> (i32, i32) {
    %c0_i32 = arith.constant 0 : i32
    %c0_i32_0 = arith.constant 0 : i32
    %c0_i32_1 = arith.constant 0 : i32
    return %c0_i32, %c0_i32_0 : i32, i32
  }
  func.func @transform_5(%arg0: i32) -> (i32, i32) {
    %c0_i32 = arith.constant 0 : i32
    %c0_i32_0 = arith.constant 0 : i32
    %c0_i32_1 = arith.constant 0 : i32
    return %c0_i32, %c0_i32_0 : i32, i32
  }
  func.func @transform_6(%arg0: i32) -> (i32, i32) {
    %c0_i32 = arith.constant 0 : i32
    %c0_i32_0 = arith.constant 0 : i32
    %c0_i32_1 = arith.constant 0 : i32
    return %c0_i32, %c0_i32_0 : i32, i32
  }
  func.func @transform_7(%arg0: i32) -> (i32, i32) {
    %c0_i32 = arith.constant 0 : i32
    %c0_i32_0 = arith.constant 0 : i32
    %c0_i32_1 = arith.constant 0 : i32
    return %c0_i32, %c0_i32_0 : i32, i32
  }
  func.func @transform_8(%arg0: i32) -> (i32, i32) {
    %c0_i32 = arith.constant 0 : i32
    %c0_i32_0 = arith.constant 0 : i32
    %c0_i32_1 = arith.constant 0 : i32
    return %c0_i32, %c0_i32_0 : i32, i32
  }
  func.func @transform_9(%arg0: i32) -> (i32, i32) {
    %c0_i32 = arith.constant 0 : i32
    %c0_i32_0 = arith.constant 0 : i32
    %c0_i32_1 = arith.constant 0 : i32
    return %c0_i32, %c0_i32_0 : i32, i32
  }
  func.func @transform_10(%arg0: i32) -> (i32, i32) {
    %c0_i32 = arith.constant 0 : i32
    %c0_i32_0 = arith.constant 0 : i32
    return %arg0, %c0_i32 : i32, i32
  }
  func.func @transform_11(%arg0: i32) -> (i32, i32) {
    %c0_i32 = arith.constant 0 : i32
    %c0_i32_0 = arith.constant 0 : i32
    return %arg0, %c0_i32 : i32, i32
  }
}

</mosaic_0001>

<llo_original>
// kernel: tpu_custom_call.1
$region0: #{tpu_custom_call.1}
  #allocation0 [shape = 'u32[]', space=smem, size = 0x4, offset = 0x4, fixed_abs, tag = 'smem constant byte address 0x4 - core index']
  #allocation1 [shape = 'u32[144,128]{1,0:T(1,128)}', space=vmem, size = 0x12000, scoped, tag = 'internal scratch']
  %s0 = inlined_call_operand.vmem [shape: bf16[128,256], index: 0, kind: input, shape index: {}]
  %s1 = inlined_call_operand.vmem [shape: f32[128,32], index: 1, kind: input, shape index: {}]
  %s2 = inlined_call_operand.vmem [shape: bf16[256,64], index: 2, kind: input, shape index: {}]
  %s3 = inlined_call_operand.vmem [shape: f32[1,64], index: 3, kind: input, shape index: {}]
  %s4 = inlined_call_operand.vmem [shape: bf16[64,64], index: 4, kind: input, shape index: {}]
  %s5 = inlined_call_operand.vmem [shape: f32[1,64], index: 5, kind: input, shape index: {}]
  %s6 = inlined_call_operand.vmem [shape: bf16[32,64], index: 6, kind: input, shape index: {}]
  %s7 = inlined_call_operand.vmem [shape: f32[1,64], index: 7, kind: input, shape index: {}]
  %s8 = inlined_call_operand.vmem [shape: bf16[64,256], index: 8, kind: input, shape index: {}]
  %s9 = inlined_call_operand.vmem [shape: f32[1,256], index: 9, kind: input, shape index: {}]
  %s10 = inlined_call_operand.hbm [shape: bf16[128,256], index: 10, kind: output, shape index: {0}]
  %s11 = inlined_call_operand.hbm [shape: bf16[128,128], index: 11, kind: output, shape index: {1}]
  %12 = xla_tuple %s10, %s11
  %s13 = sld [smem:[#allocation0]]
  $region58: #{tpu_custom_call.1} parent=0
    _
  %s15 = ssub.s32 1, %s13
  %s16 = scalar_select 0, %s15, %s13
  $region1: #{tpu_custom_call.1} parent=0
    #allocation2 [shape = 'u8[65536]{0}', space=vmem, size = 0x10000, scoped, tag = 'output window, operand 0, single buffered']
    #allocation3 [shape = 's32[1]{0}', space=sflag, size = 0x4, scoped, tag = 'scoped memory for tpu_custom_call.1']
    #allocation4 [shape = 'u8[32768]{0}', space=vmem, size = 0x8000, scoped, tag = 'output window, operand 1, single buffered']
    #allocation5 [shape = 's32[1]{0}', space=sflag, size = 0x4, scoped, tag = 'scoped memory for tpu_custom_call.1']
    %17 = vsyncpa [#allocation3], 0
    %18 = vsyncpa [#allocation5], 0
    // Predicated region
    $region2: #{tpu_custom_call.1} parent=1 // pred_check
      _
    $region3: #{tpu_custom_call.1} parent=1 // pred_check_branch
      %20 = sbr.rel (0) target = $region5
    $region4: #{tpu_custom_call.1} parent=1 // pred_region
      _
    $region5: #{tpu_custom_call.1} parent=1 // pred_fallthru
      _
    // Predicated region
    $region6: #{tpu_custom_call.1} parent=1 // pred_check
      _
    $region7: #{tpu_custom_call.1} parent=1 // pred_check_branch
      %22 = sbr.rel (0) target = $region9
    $region8: #{tpu_custom_call.1} parent=1 // pred_region
      _
    $region9: #{tpu_custom_call.1} parent=1 // pred_fallthru
      _
    // Predicated region
    $region10: #{tpu_custom_call.1} parent=1 // pred_check
      _
    $region11: #{tpu_custom_call.1} parent=1 // pred_check_branch
      %24 = sbr.rel (0) target = $region13
    $region12: #{tpu_custom_call.1} parent=1 // pred_region
      _
    $region13: #{tpu_custom_call.1} parent=1 // pred_fallthru
      _
    // Predicated region
    $region14: #{tpu_custom_call.1} parent=1 // pred_check
      _
    $region15: #{tpu_custom_call.1} parent=1 // pred_check_branch
      %26 = sbr.rel (0) target = $region17
    $region16: #{tpu_custom_call.1} parent=1 // pred_region
      _
    $region17: #{tpu_custom_call.1} parent=1 // pred_fallthru
      _
    // Predicated region
    $region18: #{tpu_custom_call.1} parent=1 // pred_check
      _
    $region19: #{tpu_custom_call.1} parent=1 // pred_check_branch
      %28 = sbr.rel (0) target = $region21
    $region20: #{tpu_custom_call.1} parent=1 // pred_region
      _
    $region21: #{tpu_custom_call.1} parent=1 // pred_fallthru
      _
    // Predicated region
    $region22: #{tpu_custom_call.1} parent=1 // pred_check
      _
    $region23: #{tpu_custom_call.1} parent=1 // pred_check_branch
      %30 = sbr.rel (0) target = $region25
    $region24: #{tpu_custom_call.1} parent=1 // pred_region
      _
    $region25: #{tpu_custom_call.1} parent=1 // pred_fallthru
      _
    // Predicated region
    $region26: #{tpu_custom_call.1} parent=1 // pred_check
      _
    $region27: #{tpu_custom_call.1} parent=1 // pred_check_branch
      %32 = sbr.rel (0) target = $region29
    $region28: #{tpu_custom_call.1} parent=1 // pred_region
      _
    $region29: #{tpu_custom_call.1} parent=1 // pred_fallthru
      _
    // Predicated region
    $region30: #{tpu_custom_call.1} parent=1 // pred_check
      _
    $region31: #{tpu_custom_call.1} parent=1 // pred_check_branch
      %34 = sbr.rel (0) target = $region33
    $region32: #{tpu_custom_call.1} parent=1 // pred_region
      _
    $region33: #{tpu_custom_call.1} parent=1 // pred_fallthru
      _
    // Predicated region
    $region34: #{tpu_custom_call.1} parent=1 // pred_check
      _
    $region35: #{tpu_custom_call.1} parent=1 // pred_check_branch
      %36 = sbr.rel (0) target = $region37
    $region36: #{tpu_custom_call.1} parent=1 // pred_region
      _
    $region37: #{tpu_custom_call.1} parent=1 // pred_fallthru
      _
    // Predicated region
    $region38: #{tpu_custom_call.1} parent=1 // pred_check
      _
    $region39: #{tpu_custom_call.1} parent=1 // pred_check_branch
      %38 = sbr.rel (0) target = $region41
    $region40: #{tpu_custom_call.1} parent=1 // pred_region
      _
    $region41: #{tpu_custom_call.1} parent=1 // pred_fallthru
      _
    %v40 = vld [vmem:[%s0] sm:$0xff]
    %v41 = vld [vmem:[%s0 + $0x8] sm:$0xff]
    %v42 = vld [vmem:[%s0 + $0x10] sm:$0xff]
    %v43 = vld [vmem:[%s0 + $0x18] sm:$0xff]
    %v44 = vld [vmem:[%s0 + $0x20] sm:$0xff]
    %v45 = vld [vmem:[%s0 + $0x28] sm:$0xff]
    %v46 = vld [vmem:[%s0 + $0x30] sm:$0xff]
    %v47 = vld [vmem:[%s0 + $0x38] sm:$0xff]
    %v48 = vld [vmem:[%s0 + $0x40] sm:$0xff]
    %v49 = vld [vmem:[%s0 + $0x48] sm:$0xff]
    %v50 = vld [vmem:[%s0 + $0x50] sm:$0xff]
    %v51 = vld [vmem:[%s0 + $0x58] sm:$0xff]
    %v52 = vld [vmem:[%s0 + $0x60] sm:$0xff]
    %v53 = vld [vmem:[%s0 + $0x68] sm:$0xff]
    %v54 = vld [vmem:[%s0 + $0x70] sm:$0xff]
    %v55 = vld [vmem:[%s0 + $0x78] sm:$0xff]
    %v56 = vld [vmem:[%s1] sm:$0xff]
    %v57 = vld [vmem:[%s1 + $0x8] sm:$0xff]
    %v58 = vld [vmem:[%s1 + $0x10] sm:$0xff]
    %v59 = vld [vmem:[%s1 + $0x18] sm:$0xff]
    %v60 = vld [vmem:[%s1 + $0x20] sm:$0xff]
    %v61 = vld [vmem:[%s1 + $0x28] sm:$0xff]
    %v62 = vld [vmem:[%s1 + $0x30] sm:$0xff]
    %v63 = vld [vmem:[%s1 + $0x38] sm:$0xff]
    %v64 = vld [vmem:[%s1 + $0x40] sm:$0xff]
    %v65 = vld [vmem:[%s1 + $0x48] sm:$0xff]
    %v66 = vld [vmem:[%s1 + $0x50] sm:$0xff]
    %v67 = vld [vmem:[%s1 + $0x58] sm:$0xff]
    %v68 = vld [vmem:[%s1 + $0x60] sm:$0xff]
    %v69 = vld [vmem:[%s1 + $0x68] sm:$0xff]
    %v70 = vld [vmem:[%s1 + $0x70] sm:$0xff]
    %v71 = vld [vmem:[%s1 + $0x78] sm:$0xff]
    %v72 = vunpack.c.l.bf16 %v40
    %v73 = vunpack.c.h.bf16 %v40
    %v74 = vunpack.c.l.bf16 %v41
    %v75 = vunpack.c.h.bf16 %v41
    %v76 = vunpack.c.l.bf16 %v42
    %v77 = vunpack.c.h.bf16 %v42
    %v78 = vunpack.c.l.bf16 %v43
    %v79 = vunpack.c.h.bf16 %v43
    %v80 = vunpack.c.l.bf16 %v44
    %v81 = vunpack.c.h.bf16 %v44
    %v82 = vunpack.c.l.bf16 %v45
    %v83 = vunpack.c.h.bf16 %v45
    %v84 = vunpack.c.l.bf16 %v46
    %v85 = vunpack.c.h.bf16 %v46
    %v86 = vunpack.c.l.bf16 %v47
    %v87 = vunpack.c.h.bf16 %v47
    %v88 = vunpack.c.l.bf16 %v48
    %v89 = vunpack.c.h.bf16 %v48
    %v90 = vunpack.c.l.bf16 %v49
    %v91 = vunpack.c.h.bf16 %v49
    %v92 = vunpack.c.l.bf16 %v50
    %v93 = vunpack.c.h.bf16 %v50
    %v94 = vunpack.c.l.bf16 %v51
    %v95 = vunpack.c.h.bf16 %v51
    %v96 = vunpack.c.l.bf16 %v52
    %v97 = vunpack.c.h.bf16 %v52
    %v98 = vunpack.c.l.bf16 %v53
    %v99 = vunpack.c.h.bf16 %v53
    %v100 = vunpack.c.l.bf16 %v54
    %v101 = vunpack.c.h.bf16 %v54
    %v102 = vunpack.c.l.bf16 %v55
    %v103 = vunpack.c.h.bf16 %v55
    %v104 = vmul.f32 %v72, %v72
    %v105 = vmul.f32 %v73, %v73
    %v106 = vmul.f32 %v74, %v74
    %v107 = vmul.f32 %v75, %v75
    %v108 = vmul.f32 %v76, %v76
    %v109 = vmul.f32 %v77, %v77
    %v110 = vmul.f32 %v78, %v78
    %v111 = vmul.f32 %v79, %v79
    %v112 = vmul.f32 %v80, %v80
    %v113 = vmul.f32 %v81, %v81
    %v114 = vmul.f32 %v82, %v82
    %v115 = vmul.f32 %v83, %v83
    %v116 = vmul.f32 %v84, %v84
    %v117 = vmul.f32 %v85, %v85
    %v118 = vmul.f32 %v86, %v86
    %v119 = vmul.f32 %v87, %v87
    %v120 = vmul.f32 %v88, %v88
    %v121 = vmul.f32 %v89, %v89
    %v122 = vmul.f32 %v90, %v90
    %v123 = vmul.f32 %v91, %v91
    %v124 = vmul.f32 %v92, %v92
    %v125 = vmul.f32 %v93, %v93
    %v126 = vmul.f32 %v94, %v94
    %v127 = vmul.f32 %v95, %v95
    %v128 = vmul.f32 %v96, %v96
    %v129 = vmul.f32 %v97, %v97
    %v130 = vmul.f32 %v98, %v98
    %v131 = vmul.f32 %v99, %v99
    %v132 = vmul.f32 %v100, %v100
    %v133 = vmul.f32 %v101, %v101
    %v134 = vmul.f32 %v102, %v102
    %v135 = vmul.f32 %v103, %v103
    %v136 = vadd.f32 %v104, %v105
    %137 = vadd.xlane.f32.xlu0 %v136
    %v138 = vpop.xlane.xlu0 %137
    %v139 = vadd.f32 %v106, %v107
    %140 = vadd.xlane.f32.xlu0 %v139
    %v141 = vpop.xlane.xlu0 %140
    %v142 = vadd.f32 %v108, %v109
    %143 = vadd.xlane.f32.xlu0 %v142
    %v144 = vpop.xlane.xlu0 %143
    %v145 = vadd.f32 %v110, %v111
    %146 = vadd.xlane.f32.xlu0 %v145
    %v147 = vpop.xlane.xlu0 %146
    %v148 = vadd.f32 %v112, %v113
    %149 = vadd.xlane.f32.xlu0 %v148
    %v150 = vpop.xlane.xlu0 %149
    %v151 = vadd.f32 %v114, %v115
    %152 = vadd.xlane.f32.xlu0 %v151
    %v153 = vpop.xlane.xlu0 %152
    %v154 = vadd.f32 %v116, %v117
    %155 = vadd.xlane.f32.xlu0 %v154
    %v156 = vpop.xlane.xlu0 %155
    %v157 = vadd.f32 %v118, %v119
    %158 = vadd.xlane.f32.xlu0 %v157
    %v159 = vpop.xlane.xlu0 %158
    %v160 = vadd.f32 %v120, %v121
    %161 = vadd.xlane.f32.xlu0 %v160
    %v162 = vpop.xlane.xlu0 %161
    %v163 = vadd.f32 %v122, %v123
    %164 = vadd.xlane.f32.xlu0 %v163
    %v165 = vpop.xlane.xlu0 %164
    %v166 = vadd.f32 %v124, %v125
    %167 = vadd.xlane.f32.xlu0 %v166
    %v168 = vpop.xlane.xlu0 %167
    %v169 = vadd.f32 %v126, %v127
    %170 = vadd.xlane.f32.xlu0 %v169
    %v171 = vpop.xlane.xlu0 %170
    %v172 = vadd.f32 %v128, %v129
    %173 = vadd.xlane.f32.xlu0 %v172
    %v174 = vpop.xlane.xlu0 %173
    %v175 = vadd.f32 %v130, %v131
    %176 = vadd.xlane.f32.xlu0 %v175
    %v177 = vpop.xlane.xlu0 %176
    %v178 = vadd.f32 %v132, %v133
    %179 = vadd.xlane.f32.xlu0 %v178
    %v180 = vpop.xlane.xlu0 %179
    %v181 = vadd.f32 %v134, %v135
    %182 = vadd.xlane.f32.xlu0 %v181
    %v183 = vpop.xlane.xlu0 %182
    %v184 = vmax.f32 %v138, 1e-24
    %v185 = vmax.f32 %v141, 1e-24
    %v186 = vmax.f32 %v144, 1e-24
    %v187 = vmax.f32 %v147, 1e-24
    %v188 = vmax.f32 %v150, 1e-24
    %v189 = vmax.f32 %v153, 1e-24
    %v190 = vmax.f32 %v156, 1e-24
    %v191 = vmax.f32 %v159, 1e-24
    %v192 = vmax.f32 %v162, 1e-24
    %v193 = vmax.f32 %v165, 1e-24
    %v194 = vmax.f32 %v168, 1e-24
    %v195 = vmax.f32 %v171, 1e-24
    %v196 = vmax.f32 %v174, 1e-24
    %v197 = vmax.f32 %v177, 1e-24
    %v198 = vmax.f32 %v180, 1e-24
    %v199 = vmax.f32 %v183, 1e-24
    %v200 = vrsqrt.pop %v184
    %v201 = vrsqrt.pop %v185
    %v202 = vrsqrt.pop %v186
    %v203 = vrsqrt.pop %v187
    %v204 = vrsqrt.pop %v188
    %v205 = vrsqrt.pop %v189
    %v206 = vrsqrt.pop %v190
    %v207 = vrsqrt.pop %v191
    %v208 = vrsqrt.pop %v192
    %v209 = vrsqrt.pop %v193
    %v210 = vrsqrt.pop %v194
    %v211 = vrsqrt.pop %v195
    %v212 = vrsqrt.pop %v196
    %v213 = vrsqrt.pop %v197
    %v214 = vrsqrt.pop %v198
    %v215 = vrsqrt.pop %v199
    %v216 = vld [vmem:[%s2] sm:$0xf]
    %v217 = vld [vmem:[%s2 + $0x4] sm:$0xf]
    %v218 = vld [vmem:[%s2 + $0x8] sm:$0xf]
    %v219 = vld [vmem:[%s2 + $0xc] sm:$0xf]
    %v220 = vld [vmem:[%s2 + $0x10] sm:$0xf]
    %v221 = vld [vmem:[%s2 + $0x14] sm:$0xf]
    %v222 = vld [vmem:[%s2 + $0x18] sm:$0xf]
    %v223 = vld [vmem:[%s2 + $0x1c] sm:$0xf]
    %v224 = vld [vmem:[%s2 + $0x20] sm:$0xf]
    %v225 = vld [vmem:[%s2 + $0x24] sm:$0xf]
    %v226 = vld [vmem:[%s2 + $0x28] sm:$0xf]
    %v227 = vld [vmem:[%s2 + $0x2c] sm:$0xf]
    %v228 = vld [vmem:[%s2 + $0x30] sm:$0xf]
    %v229 = vld [vmem:[%s2 + $0x34] sm:$0xf]
    %v230 = vld [vmem:[%s2 + $0x38] sm:$0xf]
    %v231 = vld [vmem:[%s2 + $0x3c] sm:$0xf]
    %v232 = vld [vmem:[%s2 + $0x40] sm:$0xf]
    %v233 = vld [vmem:[%s2 + $0x44] sm:$0xf]
    %v234 = vld [vmem:[%s2 + $0x48] sm:$0xf]
    %v235 = vld [vmem:[%s2 + $0x4c] sm:$0xf]
    %v236 = vld [vmem:[%s2 + $0x50] sm:$0xf]
    %v237 = vld [vmem:[%s2 + $0x54] sm:$0xf]
    %v238 = vld [vmem:[%s2 + $0x58] sm:$0xf]
    %v239 = vld [vmem:[%s2 + $0x5c] sm:$0xf]
    %v240 = vld [vmem:[%s2 + $0x60] sm:$0xf]
    %v241 = vld [vmem:[%s2 + $0x64] sm:$0xf]
    %v242 = vld [vmem:[%s2 + $0x68] sm:$0xf]
    %v243 = vld [vmem:[%s2 + $0x6c] sm:$0xf]
    %v244 = vld [vmem:[%s2 + $0x70] sm:$0xf]
    %v245 = vld [vmem:[%s2 + $0x74] sm:$0xf]
    %v246 = vld [vmem:[%s2 + $0x78] sm:$0xf]
    %v247 = vld [vmem:[%s2 + $0x7c] sm:$0xf]
    %v264 = vunpack.c.l.b16 %v40
    %v265 = vunpack.c.h.b16 %v40
    %v266 = vunpack.c.l.b16 %v41
    %v267 = vunpack.c.h.b16 %v41
    %v268 = vunpack.c.l.b16 %v42
    %v269 = vunpack.c.h.b16 %v42
    %v270 = vunpack.c.l.b16 %v43
    %v271 = vunpack.c.h.b16 %v43
    %v272 = vunpack.c.l.b16 %v44
    %v273 = vunpack.c.h.b16 %v44
    %v274 = vunpack.c.l.b16 %v45
    %v275 = vunpack.c.h.b16 %v45
    %v276 = vunpack.c.l.b16 %v46
    %v277 = vunpack.c.h.b16 %v46
    %v278 = vunpack.c.l.b16 %v47
    %v279 = vunpack.c.h.b16 %v47
    %v280 = vunpack.c.l.b16 %v48
    %v281 = vunpack.c.h.b16 %v48
    %v282 = vunpack.c.l.b16 %v49
    %v283 = vunpack.c.h.b16 %v49
    %v284 = vunpack.c.l.b16 %v50
    %v285 = vunpack.c.h.b16 %v50
    %v286 = vunpack.c.l.b16 %v51
    %v287 = vunpack.c.h.b16 %v51
    %v288 = vunpack.c.l.b16 %v52
    %v289 = vunpack.c.h.b16 %v52
    %v290 = vunpack.c.l.b16 %v53
    %v291 = vunpack.c.h.b16 %v53
    %v292 = vunpack.c.l.b16 %v54
    %v293 = vunpack.c.h.b16 %v54
    %v294 = vunpack.c.l.b16 %v55
    %v295 = vunpack.c.h.b16 %v55
    %v296 = vpack.c.b16 %v266, %v264
    %v297 = vpack.c.b16 %v267, %v265
    %v298 = vpack.c.b16 %v270, %v268
    %v299 = vpack.c.b16 %v271, %v269
    %v300 = vpack.c.b16 %v274, %v272
    %v301 = vpack.c.b16 %v275, %v273
    %v302 = vpack.c.b16 %v278, %v276
    %v303 = vpack.c.b16 %v279, %v277
    %v304 = vpack.c.b16 %v282, %v280
    %v305 = vpack.c.b16 %v283, %v281
    %v306 = vpack.c.b16 %v286, %v284
    %v307 = vpack.c.b16 %v287, %v285
    %v308 = vpack.c.b16 %v290, %v288
    %v309 = vpack.c.b16 %v291, %v289
    %v310 = vpack.c.b16 %v294, %v292
    %v311 = vpack.c.b16 %v295, %v293
    %v360 = vunpack.c.l.b16 %v216
    %v361 = vunpack.c.l.b16 %v217
    %v362 = vunpack.c.l.b16 %v218
    %v363 = vunpack.c.l.b16 %v219
    %v364 = vunpack.c.l.b16 %v220
    %v365 = vunpack.c.l.b16 %v221
    %v366 = vunpack.c.l.b16 %v222
    %v367 = vunpack.c.l.b16 %v223
    %v368 = vunpack.c.l.b16 %v224
    %v369 = vunpack.c.l.b16 %v225
    %v370 = vunpack.c.l.b16 %v226
    %v371 = vunpack.c.l.b16 %v227
    %v372 = vunpack.c.l.b16 %v228
    %v373 = vunpack.c.l.b16 %v229
    %v374 = vunpack.c.l.b16 %v230
    %v375 = vunpack.c.l.b16 %v231
    %v376 = vunpack.c.l.b16 %v232
    %v377 = vunpack.c.l.b16 %v233
    %v378 = vunpack.c.l.b16 %v234
    %v379 = vunpack.c.l.b16 %v235
    %v380 = vunpack.c.l.b16 %v236
    %v381 = vunpack.c.l.b16 %v237
    %v382 = vunpack.c.l.b16 %v238
    %v383 = vunpack.c.l.b16 %v239
    %v384 = vunpack.c.l.b16 %v240
    %v385 = vunpack.c.l.b16 %v241
    %v386 = vunpack.c.l.b16 %v242
    %v387 = vunpack.c.l.b16 %v243
    %v388 = vunpack.c.l.b16 %v244
    %v389 = vunpack.c.l.b16 %v245
    %v390 = vunpack.c.l.b16 %v246
    %v391 = vunpack.c.l.b16 %v247
    %v392 = vpack.c.b16 %v361, %v360
    %v393 = vpack.c.b16 %v363, %v362
    %v394 = vpack.c.b16 %v365, %v364
    %v395 = vpack.c.b16 %v367, %v366
    %v396 = vpack.c.b16 %v369, %v368
    %v397 = vpack.c.b16 %v371, %v370
    %v398 = vpack.c.b16 %v373, %v372
    %v399 = vpack.c.b16 %v375, %v374
    %v400 = vpack.c.b16 %v377, %v376
    %v401 = vpack.c.b16 %v379, %v378
    %v402 = vpack.c.b16 %v381, %v380
    %v403 = vpack.c.b16 %v383, %v382
    %v404 = vpack.c.b16 %v385, %v384
    %v405 = vpack.c.b16 %v387, %v386
    %v406 = vpack.c.b16 %v389, %v388
    %v407 = vpack.c.b16 %v391, %v390
    %424 = vmatprep.subr.bf16.mxu0 0
    %425 = vmatpush1.bf16.msra.mxu0 %v392
    %426 = vmatprep.subr.bf16.mxu0 0
    %427 = vmatpush1.bf16.msra.mxu0 %v393
    %428 = vmatprep.subr.bf16.mxu0 0
    %429 = vmatpush1.bf16.msra.mxu0 %v394
    %430 = vmatprep.subr.bf16.mxu0 0
    %431 = vmatpush1.bf16.msra.mxu0 %v395
    %432 = vmatprep.subr.bf16.mxu0 0
    %433 = vmatpush1.bf16.msra.mxu0 %v396
    %434 = vmatprep.subr.bf16.mxu0 0
    %435 = vmatpush1.bf16.msra.mxu0 %v397
    %436 = vmatprep.subr.bf16.mxu0 0
    %437 = vmatpush1.bf16.msra.mxu0 %v398
    %438 = vmatprep.subr.bf16.mxu0 0
    %439 = vmatpush1.bf16.msra.mxu0 %v399
    %440 = vmatprep.subr.bf16.mxu0 0
    %441 = vmatpush1.bf16.msra.mxu0 %v400
    %442 = vmatprep.subr.bf16.mxu0 0
    %443 = vmatpush1.bf16.msra.mxu0 %v401
    %444 = vmatprep.subr.bf16.mxu0 0
    %445 = vmatpush1.bf16.msra.mxu0 %v402
    %446 = vmatprep.subr.bf16.mxu0 0
    %447 = vmatpush1.bf16.msra.mxu0 %v403
    %448 = vmatprep.subr.bf16.mxu0 0
    %449 = vmatpush1.bf16.msra.mxu0 %v404
    %450 = vmatprep.subr.bf16.mxu0 0
    %451 = vmatpush1.bf16.msra.mxu0 %v405
    %452 = vmatprep.subr.bf16.mxu0 0
    %453 = vmatpush1.bf16.msra.mxu0 %v406
    %454 = vmatprep.subr.bf16.mxu0 0
    %455 = vmatpush1.bf16.msra.mxu0 %v407
    %456 = vmatprep.mubr.bf16.mxu0 %v297
    %457 = vmatmul.mubr.bf16.gmra.mrb[0].mxu0 %v296
    %v458 = vpop.f32.mrb[0].mxu0
    %v459 = vadd.f32 0.0, %v458
    %v460 = vpop.f32.mrb[0].mxu0
    %v461 = vpop.f32.mrb[0].mxu0
    %v462 = vadd.f32 0.0, %v461
    %v463 = vpop.f32.mrb[0].mxu0
    %464 = vmatprep.mubr.bf16.mxu0 %v299
    %465 = vmatmul.mubr.bf16.gmra.mrb[0].mxu0 %v298
    %v466 = vpop.f32.mrb[0].mxu0
    %v467 = vadd.f32 0.0, %v466
    %v468 = vpop.f32.mrb[0].mxu0
    %v469 = vpop.f32.mrb[0].mxu0
    %v470 = vadd.f32 0.0, %v469
    %v471 = vpop.f32.mrb[0].mxu0
    %472 = vmatprep.mubr.bf16.mxu0 %v301
    %473 = vmatmul.mubr.bf16.gmra.mrb[0].mxu0 %v300
    %v474 = vpop.f32.mrb[0].mxu0
    %v475 = vadd.f32 0.0, %v474
    %v476 = vpop.f32.mrb[0].mxu0
    %v477 = vpop.f32.mrb[0].mxu0
    %v478 = vadd.f32 0.0, %v477
    %v479 = vpop.f32.mrb[0].mxu0
    %480 = vmatprep.mubr.bf16.mxu0 %v303
    %481 = vmatmul.mubr.bf16.gmra.mrb[0].mxu0 %v302
    %v482 = vpop.f32.mrb[0].mxu0
    %v483 = vadd.f32 0.0, %v482
    %v484 = vpop.f32.mrb[0].mxu0
    %v485 = vpop.f32.mrb[0].mxu0
    %v486 = vadd.f32 0.0, %v485
    %v487 = vpop.f32.mrb[0].mxu0
    %488 = vmatprep.mubr.bf16.mxu0 %v305
    %489 = vmatmul.mubr.bf16.gmra.mrb[0].mxu0 %v304
    %v490 = vpop.f32.mrb[0].mxu0
    %v491 = vadd.f32 0.0, %v490
    %v492 = vpop.f32.mrb[0].mxu0
    %v493 = vpop.f32.mrb[0].mxu0
    %v494 = vadd.f32 0.0, %v493
    %v495 = vpop.f32.mrb[0].mxu0
    %496 = vmatprep.mubr.bf16.mxu0 %v307
    %497 = vmatmul.mubr.bf16.gmra.mrb[0].mxu0 %v306
    %v498 = vpop.f32.mrb[0].mxu0
    %v499 = vadd.f32 0.0, %v498
    %v500 = vpop.f32.mrb[0].mxu0
    %v501 = vpop.f32.mrb[0].mxu0
    %v502 = vadd.f32 0.0, %v501
    %v503 = vpop.f32.mrb[0].mxu0
    %504 = vmatprep.mubr.bf16.mxu0 %v309
    %505 = vmatmul.mubr.bf16.gmra.mrb[0].mxu0 %v308
    %v506 = vpop.f32.mrb[0].mxu0
    %v507 = vadd.f32 0.0, %v506
    %v508 = vpop.f32.mrb[0].mxu0
    %v509 = vpop.f32.mrb[0].mxu0
    %v510 = vadd.f32 0.0, %v509
    %v511 = vpop.f32.mrb[0].mxu0
    %512 = vmatprep.mubr.bf16.mxu0 %v311
    %513 = vmatmul.mubr.bf16.gmra.mrb[0].mxu0 %v310
    %v514 = vpop.f32.mrb[0].mxu0
    %v515 = vadd.f32 0.0, %v514
    %v516 = vpop.f32.mrb[0].mxu0
    %v517 = vpop.f32.mrb[0].mxu0
    %v518 = vadd.f32 0.0, %v517
    %v519 = vpop.f32.mrb[0].mxu0
    %520 = vdwg.mxu0
    %v521 = vmul.f32 %v459, %v200
    %v522 = vmul.f32 %v462, %v201
    %v523 = vmul.f32 %v467, %v202
    %v524 = vmul.f32 %v470, %v203
    %v525 = vmul.f32 %v475, %v204
    %v526 = vmul.f32 %v478, %v205
    %v527 = vmul.f32 %v483, %v206
    %v528 = vmul.f32 %v486, %v207
    %v529 = vmul.f32 %v491, %v208
    %v530 = vmul.f32 %v494, %v209
    %v531 = vmul.f32 %v499, %v210
    %v532 = vmul.f32 %v502, %v211
    %v533 = vmul.f32 %v507, %v212
    %v534 = vmul.f32 %v510, %v213
    %v535 = vmul.f32 %v515, %v214
    %v536 = vmul.f32 %v518, %v215
    %v537 = vld [vmem:[%s3] sm:$0x1]
    %v539 = vlaneseq
    %v540 = vshrl.u32 %v539, 7
    %v541 = vsub.s32 0, %v540
    %v542 = vrot.slane %v537, %v541
    %v544 = vadd.f32 %v521, %v542
    %v545 = vadd.f32 %v522, %v542
    %v546 = vadd.f32 %v523, %v542
    %v547 = vadd.f32 %v524, %v542
    %v548 = vadd.f32 %v525, %v542
    %v549 = vadd.f32 %v526, %v542
    %v550 = vadd.f32 %v527, %v542
    %v551 = vadd.f32 %v528, %v542
    %v552 = vadd.f32 %v529, %v542
    %v553 = vadd.f32 %v530, %v542
    %v554 = vadd.f32 %v531, %v542
    %v555 = vadd.f32 %v532, %v542
    %v556 = vadd.f32 %v533, %v542
    %v557 = vadd.f32 %v534, %v542
    %v558 = vadd.f32 %v535, %v542
    %v559 = vadd.f32 %v536, %v542
    %v560 = vtanh.pop %v544
    %v561 = vtanh.pop %v545
    %v562 = vtanh.pop %v546
    %v563 = vtanh.pop %v547
    %v564 = vtanh.pop %v548
    %v565 = vtanh.pop %v549
    %v566 = vtanh.pop %v550
    %v567 = vtanh.pop %v551
    %v568 = vtanh.pop %v552
    %v569 = vtanh.pop %v553
    %v570 = vtanh.pop %v554
    %v571 = vtanh.pop %v555
    %v572 = vtanh.pop %v556
    %v573 = vtanh.pop %v557
    %v574 = vtanh.pop %v558
    %v575 = vtanh.pop %v559
    %v576 = vpack.c.bf16 %v561, %v560
    %v577 = vpack.c.bf16 %v563, %v562
    %v578 = vpack.c.bf16 %v565, %v564
    %v579 = vpack.c.bf16 %v567, %v566
    %v580 = vpack.c.bf16 %v569, %v568
    %v581 = vpack.c.bf16 %v571, %v570
    %v582 = vpack.c.bf16 %v573, %v572
    %v583 = vpack.c.bf16 %v575, %v574
    %v584 = vld [vmem:[%s4] sm:$0xf]
    %v585 = vld [vmem:[%s4 + $0x4] sm:$0xf]
    %v586 = vld [vmem:[%s4 + $0x8] sm:$0xf]
    %v587 = vld [vmem:[%s4 + $0xc] sm:$0xf]
    %v588 = vld [vmem:[%s4 + $0x10] sm:$0xf]
    %v589 = vld [vmem:[%s4 + $0x14] sm:$0xf]
    %v590 = vld [vmem:[%s4 + $0x18] sm:$0xf]
    %v591 = vld [vmem:[%s4 + $0x1c] sm:$0xf]
    %v592 = vld [vmem:[%s5] sm:$0x1]
    %v594 = vlaneseq
    %v595 = vshrl.u32 %v594, 7
    %v596 = vsub.s32 0, %v595
    %v597 = vrot.slane %v592, %v596
    %v607 = vunpack.c.l.b16 %v584
    %v608 = vunpack.c.l.b16 %v585
    %v609 = vunpack.c.l.b16 %v586
    %v610 = vunpack.c.l.b16 %v587
    %v611 = vunpack.c.l.b16 %v588
    %v612 = vunpack.c.l.b16 %v589
    %v613 = vunpack.c.l.b16 %v590
    %v614 = vunpack.c.l.b16 %v591
    %v615 = vpack.c.b16 %v608, %v607
    %v616 = vpack.c.b16 %v610, %v609
    %v617 = vpack.c.b16 %v612, %v611
    %v618 = vpack.c.b16 %v614, %v613
    %vm623 = vcmask 523264
    %v625 = vsel %vm623, %v576, 0
    %v628 = vsel %vm623, %v577, 0
    %v631 = vsel %vm623, %v578, 0
    %v634 = vsel %vm623, %v579, 0
    %v637 = vsel %vm623, %v580, 0
    %v640 = vsel %vm623, %v581, 0
    %v643 = vsel %vm623, %v582, 0
    %v646 = vsel %vm623, %v583, 0
    %648 = vmatprep.subr.bf16.mxu0 0
    %649 = vmatpush1.bf16.msra.mxu0 %v615
    %650 = vmatprep.subr.bf16.mxu0 0
    %651 = vmatpush1.bf16.msra.mxu0 %v616
    %652 = vmatprep.subr.bf16.mxu0 0
    %653 = vmatpush1.bf16.msra.mxu0 %v617
    %654 = vmatprep.subr.bf16.mxu0 0
    %655 = vmatpush1.bf16.msra.mxu0 %v618
    %656 = vmatprep.subr.bf16.mxu0 0
    %657 = vmatpush1.bf16.msra.mxu0 0
    %658 = vmatprep.subr.bf16.mxu0 0
    %659 = vmatpush1.bf16.msra.mxu0 0
    %660 = vmatprep.subr.bf16.mxu0 0
    %661 = vmatpush1.bf16.msra.mxu0 0
    %662 = vmatprep.subr.bf16.mxu0 0
    %663 = vmatpush1.bf16.msra.mxu0 0
    %664 = vmatprep.subr.bf16.mxu0 0
    %665 = vmatpush1.bf16.msra.mxu0 0
    %666 = vmatprep.subr.bf16.mxu0 0
    %667 = vmatpush1.bf16.msra.mxu0 0
    %668 = vmatprep.subr.bf16.mxu0 0
    %669 = vmatpush1.bf16.msra.mxu0 0
    %670 = vmatprep.subr.bf16.mxu0 0
    %671 = vmatpush1.bf16.msra.mxu0 0
    %672 = vmatprep.subr.bf16.mxu0 0
    %673 = vmatpush1.bf16.msra.mxu0 0
    %674 = vmatprep.subr.bf16.mxu0 0
    %675 = vmatpush1.bf16.msra.mxu0 0
    %676 = vmatprep.subr.bf16.mxu0 0
    %677 = vmatpush1.bf16.msra.mxu0 0
    %678 = vmatprep.subr.bf16.mxu0 0
    %679 = vmatpush1.bf16.msra.mxu0 0
    %680 = vmatprep.mubr.bf16.mxu0 0
    %681 = vmatmul.mubr.bf16.gmra.mrb[0].mxu0 %v625
    %v682 = vpop.f32.mrb[0].mxu0
    %v683 = vadd.f32 %v597, %v682
    %v684 = vpop.f32.mrb[0].mxu0
    %v685 = vpop.f32.mrb[0].mxu0
    %v686 = vadd.f32 %v597, %v685
    %v687 = vpop.f32.mrb[0].mxu0
    %688 = vmatprep.mubr.bf16.mxu0 0
    %689 = vmatmul.mubr.bf16.gmra.mrb[0].mxu0 %v628
    %v690 = vpop.f32.mrb[0].mxu0
    %v691 = vadd.f32 %v597, %v690
    %v692 = vpop.f32.mrb[0].mxu0
    %v693 = vpop.f32.mrb[0].mxu0
    %v694 = vadd.f32 %v597, %v693
    %v695 = vpop.f32.mrb[0].mxu0
    %696 = vmatprep.mubr.bf16.mxu0 0
    %697 = vmatmul.mubr.bf16.gmra.mrb[0].mxu0 %v631
    %v698 = vpop.f32.mrb[0].mxu0
    %v699 = vadd.f32 %v597, %v698
    %v700 = vpop.f32.mrb[0].mxu0
    %v701 = vpop.f32.mrb[0].mxu0
    %v702 = vadd.f32 %v597, %v701
    %v703 = vpop.f32.mrb[0].mxu0
    %704 = vmatprep.mubr.bf16.mxu0 0
    %705 = vmatmul.mubr.bf16.gmra.mrb[0].mxu0 %v634
    %v706 = vpop.f32.mrb[0].mxu0
    %v707 = vadd.f32 %v597, %v706
    %v708 = vpop.f32.mrb[0].mxu0
    %v709 = vpop.f32.mrb[0].mxu0
    %v710 = vadd.f32 %v597, %v709
    %v711 = vpop.f32.mrb[0].mxu0
    %712 = vmatprep.mubr.bf16.mxu0 0
    %713 = vmatmul.mubr.bf16.gmra.mrb[0].mxu0 %v637
    %v714 = vpop.f32.mrb[0].mxu0
    %v715 = vadd.f32 %v597, %v714
    %v716 = vpop.f32.mrb[0].mxu0
    %v717 = vpop.f32.mrb[0].mxu0
    %v718 = vadd.f32 %v597, %v717
    %v719 = vpop.f32.mrb[0].mxu0
    %720 = vmatprep.mubr.bf16.mxu0 0
    %721 = vmatmul.mubr.bf16.gmra.mrb[0].mxu0 %v640
    %v722 = vpop.f32.mrb[0].mxu0
    %v723 = vadd.f32 %v597, %v722
    %v724 = vpop.f32.mrb[0].mxu0
    %v725 = vpop.f32.mrb[0].mxu0
    %v726 = vadd.f32 %v597, %v725
    %v727 = vpop.f32.mrb[0].mxu0
    %728 = vmatprep.mubr.bf16.mxu0 0
    %729 = vmatmul.mubr.bf16.gmra.mrb[0].mxu0 %v643
    %v730 = vpop.f32.mrb[0].mxu0
    %v731 = vadd.f32 %v597, %v730
    %v732 = vpop.f32.mrb[0].mxu0
    %v733 = vpop.f32.mrb[0].mxu0
    %v734 = vadd.f32 %v597, %v733
    %v735 = vpop.f32.mrb[0].mxu0
    %736 = vmatprep.mubr.bf16.mxu0 0
    %737 = vmatmul.mubr.bf16.gmra.mrb[0].mxu0 %v646
    %v738 = vpop.f32.mrb[0].mxu0
    %v739 = vadd.f32 %v597, %v738
    %v740 = vpop.f32.mrb[0].mxu0
    %v741 = vpop.f32.mrb[0].mxu0
    %v742 = vadd.f32 %v597, %v741
    %v743 = vpop.f32.mrb[0].mxu0
    %744 = vdwg.mxu0
    %v745 = vmul.f32 %v683, 0.5
    %v746 = vmul.f32 %v686, 0.5
    %v747 = vmul.f32 %v691, 0.5
    %v748 = vmul.f32 %v694, 0.5
    %v749 = vmul.f32 %v699, 0.5
    %v750 = vmul.f32 %v702, 0.5
    %v751 = vmul.f32 %v707, 0.5
    %v752 = vmul.f32 %v710, 0.5
    %v753 = vmul.f32 %v715, 0.5
    %v754 = vmul.f32 %v718, 0.5
    %v755 = vmul.f32 %v723, 0.5
    %v756 = vmul.f32 %v726, 0.5
    %v757 = vmul.f32 %v731, 0.5
    %v758 = vmul.f32 %v734, 0.5
    %v759 = vmul.f32 %v739, 0.5
    %v760 = vmul.f32 %v742, 0.5
    %v761 = vmul.f32 %v745, 1.442695
    %v762 = vpow.pop %v761
    %v763 = vmul.f32 %v746, 1.442695
    %v764 = vpow.pop %v763
    %v765 = vmul.f32 %v747, 1.442695
    %v766 = vpow.pop %v765
    %v767 = vmul.f32 %v748, 1.442695
    %v768 = vpow.pop %v767
    %v769 = vmul.f32 %v749, 1.442695
    %v770 = vpow.pop %v769
    %v771 = vmul.f32 %v750, 1.442695
    %v772 = vpow.pop %v771
    %v773 = vmul.f32 %v751, 1.442695
    %v774 = vpow.pop %v773
    %v775 = vmul.f32 %v752, 1.442695
    %v776 = vpow.pop %v775
    %v777 = vmul.f32 %v753, 1.442695
    %v778 = vpow.pop %v777
    %v779 = vmul.f32 %v754, 1.442695
    %v780 = vpow.pop %v779
    %v781 = vmul.f32 %v755, 1.442695
    %v782 = vpow.pop %v781
    %v783 = vmul.f32 %v756, 1.442695
    %v784 = vpow.pop %v783
    %v785 = vmul.f32 %v757, 1.442695
    %v786 = vpow.pop %v785
    %v787 = vmul.f32 %v758, 1.442695
    %v788 = vpow.pop %v787
    %v789 = vmul.f32 %v759, 1.442695
    %v790 = vpow.pop %v789
    %v791 = vmul.f32 %v760, 1.442695
    %v792 = vpow.pop %v791
    %809 = vrot.lane.b32.xlu0 %v762, 96
    %v810 = vpop.permute.xlu0 %809
    %811 = vrot.lane.b32.xlu0 %v764, 96
    %v812 = vpop.permute.xlu0 %811
    %813 = vrot.lane.b32.xlu0 %v766, 96
    %v814 = vpop.permute.xlu0 %813
    %815 = vrot.lane.b32.xlu0 %v768, 96
    %v816 = vpop.permute.xlu0 %815
    %817 = vrot.lane.b32.xlu0 %v770, 96
    %v818 = vpop.permute.xlu0 %817
    %819 = vrot.lane.b32.xlu0 %v772, 96
    %v820 = vpop.permute.xlu0 %819
    %821 = vrot.lane.b32.xlu0 %v774, 96
    %v822 = vpop.permute.xlu0 %821
    %823 = vrot.lane.b32.xlu0 %v776, 96
    %v824 = vpop.permute.xlu0 %823
    %825 = vrot.lane.b32.xlu0 %v778, 96
    %v826 = vpop.permute.xlu0 %825
    %827 = vrot.lane.b32.xlu0 %v780, 96
    %v828 = vpop.permute.xlu0 %827
    %829 = vrot.lane.b32.xlu0 %v782, 96
    %v830 = vpop.permute.xlu0 %829
    %831 = vrot.lane.b32.xlu0 %v784, 96
    %v832 = vpop.permute.xlu0 %831
    %833 = vrot.lane.b32.xlu0 %v786, 96
    %v834 = vpop.permute.xlu0 %833
    %835 = vrot.lane.b32.xlu0 %v788, 96
    %v836 = vpop.permute.xlu0 %835
    %837 = vrot.lane.b32.xlu0 %v790, 96
    %v838 = vpop.permute.xlu0 %837
    %839 = vrot.lane.b32.xlu0 %v792, 96
    %v840 = vpop.permute.xlu0 %839
    %v857 = vmul.f32 %v56, %v810
    %v858 = vmul.f32 %v57, %v812
    %v859 = vmul.f32 %v58, %v814
    %v860 = vmul.f32 %v59, %v816
    %v861 = vmul.f32 %v60, %v818
    %v862 = vmul.f32 %v61, %v820
    %v863 = vmul.f32 %v62, %v822
    %v864 = vmul.f32 %v63, %v824
    %v865 = vmul.f32 %v64, %v826
    %v866 = vmul.f32 %v65, %v828
    %v867 = vmul.f32 %v66, %v830
    %v868 = vmul.f32 %v67, %v832
    %v869 = vmul.f32 %v68, %v834
    %v870 = vmul.f32 %v69, %v836
    %v871 = vmul.f32 %v70, %v838
    %v872 = vmul.f32 %v71, %v840
    %v873 = vadd.f32 %v683, %v857
    %v874 = vadd.f32 %v686, %v858
    %v875 = vadd.f32 %v691, %v859
    %v876 = vadd.f32 %v694, %v860
    %v877 = vadd.f32 %v699, %v861
    %v878 = vadd.f32 %v702, %v862
    %v879 = vadd.f32 %v707, %v863
    %v880 = vadd.f32 %v710, %v864
    %v881 = vadd.f32 %v715, %v865
    %v882 = vadd.f32 %v718, %v866
    %v883 = vadd.f32 %v723, %v867
    %v884 = vadd.f32 %v726, %v868
    %v885 = vadd.f32 %v731, %v869
    %v886 = vadd.f32 %v734, %v870
    %v887 = vadd.f32 %v739, %v871
    %v888 = vadd.f32 %v742, %v872
    %v889 = vpack.c.bf16 %v874, %v873
    %v890 = vpack.c.bf16 %v876, %v875
    %v891 = vpack.c.bf16 %v878, %v877
    %v892 = vpack.c.bf16 %v880, %v879
    %v893 = vpack.c.bf16 %v882, %v881
    %v894 = vpack.c.bf16 %v884, %v883
    %v895 = vpack.c.bf16 %v886, %v885
    %v896 = vpack.c.bf16 %v888, %v887
    %v897 = vld [vmem:[%s6] sm:$0xf]
    %v898 = vld [vmem:[%s6 + $0x4] sm:$0xf]
    %v899 = vld [vmem:[%s6 + $0x8] sm:$0xf]
    %v900 = vld [vmem:[%s6 + $0xc] sm:$0xf]
    %v901 = vld [vmem:[%s7] sm:$0x1]
    %v903 = vlaneseq
    %v904 = vshrl.u32 %v903, 7
    %v905 = vsub.s32 0, %v904
    %v906 = vrot.slane %v901, %v905
    %v912 = vunpack.c.l.b16 %v897
    %v913 = vunpack.c.l.b16 %v898
    %v914 = vunpack.c.l.b16 %v899
    %v915 = vunpack.c.l.b16 %v900
    %v916 = vpack.c.b16 %v913, %v912
    %v917 = vpack.c.b16 %v915, %v914
    %vm920 = vcmask 261120
    %v922 = vsel %vm920, %v889, 0
    %v925 = vsel %vm920, %v890, 0
    %v928 = vsel %vm920, %v891, 0
    %v931 = vsel %vm920, %v892, 0
    %v934 = vsel %vm920, %v893, 0
    %v937 = vsel %vm920, %v894, 0
    %v940 = vsel %vm920, %v895, 0
    %v943 = vsel %vm920, %v896, 0
    %945 = vmatprep.subr.bf16.mxu0 0
    %946 = vmatpush1.bf16.msra.mxu0 %v916
    %947 = vmatprep.subr.bf16.mxu0 0
    %948 = vmatpush1.bf16.msra.mxu0 %v917
    %949 = vmatprep.subr.bf16.mxu0 0
    %950 = vmatpush1.bf16.msra.mxu0 0
    %951 = vmatprep.subr.bf16.mxu0 0
    %952 = vmatpush1.bf16.msra.mxu0 0
    %953 = vmatprep.subr.bf16.mxu0 0
    %954 = vmatpush1.bf16.msra.mxu0 0
    %955 = vmatprep.subr.bf16.mxu0 0
    %956 = vmatpush1.bf16.msra.mxu0 0
    %957 = vmatprep.subr.bf16.mxu0 0
    %958 = vmatpush1.bf16.msra.mxu0 0
    %959 = vmatprep.subr.bf16.mxu0 0
    %960 = vmatpush1.bf16.msra.mxu0 0
    %961 = vmatprep.subr.bf16.mxu0 0
    %962 = vmatpush1.bf16.msra.mxu0 0
    %963 = vmatprep.subr.bf16.mxu0 0
    %964 = vmatpush1.bf16.msra.mxu0 0
    %965 = vmatprep.subr.bf16.mxu0 0
    %966 = vmatpush1.bf16.msra.mxu0 0
    %967 = vmatprep.subr.bf16.mxu0 0
    %968 = vmatpush1.bf16.msra.mxu0 0
    %969 = vmatprep.subr.bf16.mxu0 0
    %970 = vmatpush1.bf16.msra.mxu0 0
    %971 = vmatprep.subr.bf16.mxu0 0
    %972 = vmatpush1.bf16.msra.mxu0 0
    %973 = vmatprep.subr.bf16.mxu0 0
    %974 = vmatpush1.bf16.msra.mxu0 0
    %975 = vmatprep.subr.bf16.mxu0 0
    %976 = vmatpush1.bf16.msra.mxu0 0
    %977 = vmatprep.mubr.bf16.mxu0 0
    %978 = vmatmul.mubr.bf16.gmra.mrb[0].mxu0 %v922
    %v979 = vpop.f32.mrb[0].mxu0
    %v980 = vadd.f32 %v906, %v979
    %v981 = vpop.f32.mrb[0].mxu0
    %v982 = vpop.f32.mrb[0].mxu0
    %v983 = vadd.f32 %v906, %v982
    %v984 = vpop.f32.mrb[0].mxu0
    %985 = vmatprep.mubr.bf16.mxu0 0
    %986 = vmatmul.mubr.bf16.gmra.mrb[0].mxu0 %v925
    %v987 = vpop.f32.mrb[0].mxu0
    %v988 = vadd.f32 %v906, %v987
    %v989 = vpop.f32.mrb[0].mxu0
    %v990 = vpop.f32.mrb[0].mxu0
    %v991 = vadd.f32 %v906, %v990
    %v992 = vpop.f32.mrb[0].mxu0
    %993 = vmatprep.mubr.bf16.mxu0 0
    %994 = vmatmul.mubr.bf16.gmra.mrb[0].mxu0 %v928
    %v995 = vpop.f32.mrb[0].mxu0
    %v996 = vadd.f32 %v906, %v995
    %v997 = vpop.f32.mrb[0].mxu0
    %v998 = vpop.f32.mrb[0].mxu0
    %v999 = vadd.f32 %v906, %v998
    %v1000 = vpop.f32.mrb[0].mxu0
    %1001 = vmatprep.mubr.bf16.mxu0 0
    %1002 = vmatmul.mubr.bf16.gmra.mrb[0].mxu0 %v931
    %v1003 = vpop.f32.mrb[0].mxu0
    %v1004 = vadd.f32 %v906, %v1003
    %v1005 = vpop.f32.mrb[0].mxu0
    %v1006 = vpop.f32.mrb[0].mxu0
    %v1007 = vadd.f32 %v906, %v1006
    %v1008 = vpop.f32.mrb[0].mxu0
    %1009 = vmatprep.mubr.bf16.mxu0 0
    %1010 = vmatmul.mubr.bf16.gmra.mrb[0].mxu0 %v934
    %v1011 = vpop.f32.mrb[0].mxu0
    %v1012 = vadd.f32 %v906, %v1011
    %v1013 = vpop.f32.mrb[0].mxu0
    %v1014 = vpop.f32.mrb[0].mxu0
    %v1015 = vadd.f32 %v906, %v1014
    %v1016 = vpop.f32.mrb[0].mxu0
    %1017 = vmatprep.mubr.bf16.mxu0 0
    %1018 = vmatmul.mubr.bf16.gmra.mrb[0].mxu0 %v937
    %v1019 = vpop.f32.mrb[0].mxu0
    %v1020 = vadd.f32 %v906, %v1019
    %v1021 = vpop.f32.mrb[0].mxu0
    %v1022 = vpop.f32.mrb[0].mxu0
    %v1023 = vadd.f32 %v906, %v1022
    %v1024 = vpop.f32.mrb[0].mxu0
    %1025 = vmatprep.mubr.bf16.mxu0 0
    %1026 = vmatmul.mubr.bf16.gmra.mrb[0].mxu0 %v940
    %v1027 = vpop.f32.mrb[0].mxu0
    %v1028 = vadd.f32 %v906, %v1027
    %v1029 = vpop.f32.mrb[0].mxu0
    %v1030 = vpop.f32.mrb[0].mxu0
    %v1031 = vadd.f32 %v906, %v1030
    %v1032 = vpop.f32.mrb[0].mxu0
    %1033 = vmatprep.mubr.bf16.mxu0 0
    %1034 = vmatmul.mubr.bf16.gmra.mrb[0].mxu0 %v943
    %v1035 = vpop.f32.mrb[0].mxu0
    %v1036 = vadd.f32 %v906, %v1035
    %v1037 = vpop.f32.mrb[0].mxu0
    %v1038 = vpop.f32.mrb[0].mxu0
    %v1039 = vadd.f32 %v906, %v1038
    %v1040 = vpop.f32.mrb[0].mxu0
    %1041 = vdwg.mxu0
    %v1042 = vtanh.pop %v980
    %v1043 = vtanh.pop %v983
    %v1044 = vtanh.pop %v988
    %v1045 = vtanh.pop %v991
    %v1046 = vtanh.pop %v996
    %v1047 = vtanh.pop %v999
    %v1048 = vtanh.pop %v1004
    %v1049 = vtanh.pop %v1007
    %v1050 = vtanh.pop %v1012
    %v1051 = vtanh.pop %v1015
    %v1052 = vtanh.pop %v1020
    %v1053 = vtanh.pop %v1023
    %v1054 = vtanh.pop %v1028
    %v1055 = vtanh.pop %v1031
    %v1056 = vtanh.pop %v1036
    %v1057 = vtanh.pop %v1039
    %v1058 = vpack.c.bf16 %v1043, %v1042
    %v1059 = vpack.c.bf16 %v1045, %v1044
    %v1060 = vpack.c.bf16 %v1047, %v1046
    %v1061 = vpack.c.bf16 %v1049, %v1048
    %v1062 = vpack.c.bf16 %v1051, %v1050
    %v1063 = vpack.c.bf16 %v1053, %v1052
    %v1064 = vpack.c.bf16 %v1055, %v1054
    %v1065 = vpack.c.bf16 %v1057, %v1056
    %v1066 = vld [vmem:[%s8] sm:$0xff]
    %v1067 = vld [vmem:[%s8 + $0x8] sm:$0xff]
    %v1068 = vld [vmem:[%s8 + $0x10] sm:$0xff]
    %v1069 = vld [vmem:[%s8 + $0x18] sm:$0xff]
    %v1070 = vld [vmem:[%s8 + $0x20] sm:$0xff]
    %v1071 = vld [vmem:[%s8 + $0x28] sm:$0xff]
    %v1072 = vld [vmem:[%s8 + $0x30] sm:$0xff]
    %v1073 = vld [vmem:[%s8 + $0x38] sm:$0xff]
    %v1074 = vld [vmem:[%s9] sm:$0x3]
    %v1076 = vlaneseq
    %v1077 = vshrl.u32 %v1076, 7
    %v1078 = vsub.s32 0, %v1077
    %v1079 = vrot.slane %v1074, %v1078
    %v1080 = vlaneseq
    %v1081 = vshrl.u32 %v1080, 7
    %v1082 = vsub.s32 1, %v1081
    %v1083 = vrot.slane %v1074, %v1082
    %v1094 = vunpack.c.l.b16 %v1066
    %v1095 = vunpack.c.h.b16 %v1066
    %v1096 = vunpack.c.l.b16 %v1067
    %v1097 = vunpack.c.h.b16 %v1067
    %v1098 = vunpack.c.l.b16 %v1068
    %v1099 = vunpack.c.h.b16 %v1068
    %v1100 = vunpack.c.l.b16 %v1069
    %v1101 = vunpack.c.h.b16 %v1069
    %v1102 = vunpack.c.l.b16 %v1070
    %v1103 = vunpack.c.h.b16 %v1070
    %v1104 = vunpack.c.l.b16 %v1071
    %v1105 = vunpack.c.h.b16 %v1071
    %v1106 = vunpack.c.l.b16 %v1072
    %v1107 = vunpack.c.h.b16 %v1072
    %v1108 = vunpack.c.l.b16 %v1073
    %v1109 = vunpack.c.h.b16 %v1073
    %v1110 = vpack.c.b16 %v1096, %v1094
    %v1111 = vpack.c.b16 %v1097, %v1095
    %v1112 = vpack.c.b16 %v1100, %v1098
    %v1113 = vpack.c.b16 %v1101, %v1099
    %v1114 = vpack.c.b16 %v1104, %v1102
    %v1115 = vpack.c.b16 %v1105, %v1103
    %v1116 = vpack.c.b16 %v1108, %v1106
    %v1117 = vpack.c.b16 %v1109, %v1107
    %v1127 = vsel %vm623, %v1058, 0
    %v1130 = vsel %vm623, %v1059, 0
    %v1133 = vsel %vm623, %v1060, 0
    %v1136 = vsel %vm623, %v1061, 0
    %v1139 = vsel %vm623, %v1062, 0
    %v1142 = vsel %vm623, %v1063, 0
    %v1145 = vsel %vm623, %v1064, 0
    %v1148 = vsel %vm623, %v1065, 0
    %1150 = vmatprep.subr.bf16.mxu0 %v1111
    %1151 = vmatpush1.bf16.msra.mxu0 %v1110
    %1152 = vmatprep.subr.bf16.mxu0 %v1113
    %1153 = vmatpush1.bf16.msra.mxu0 %v1112
    %1154 = vmatprep.subr.bf16.mxu0 %v1115
    %1155 = vmatpush1.bf16.msra.mxu0 %v1114
    %1156 = vmatprep.subr.bf16.mxu0 %v1117
    %1157 = vmatpush1.bf16.msra.mxu0 %v1116
    %1158 = vmatprep.subr.bf16.mxu0 0
    %1159 = vmatpush1.bf16.msra.mxu0 0
    %1160 = vmatprep.subr.bf16.mxu0 0
    %1161 = vmatpush1.bf16.msra.mxu0 0
    %1162 = vmatprep.subr.bf16.mxu0 0
    %1163 = vmatpush1.bf16.msra.mxu0 0
    %1164 = vmatprep.subr.bf16.mxu0 0
    %1165 = vmatpush1.bf16.msra.mxu0 0
    %1166 = vmatprep.subr.bf16.mxu0 0
    %1167 = vmatpush1.bf16.msra.mxu0 0
    %1168 = vmatprep.subr.bf16.mxu0 0
    %1169 = vmatpush1.bf16.msra.mxu0 0
    %1170 = vmatprep.subr.bf16.mxu0 0
    %1171 = vmatpush1.bf16.msra.mxu0 0
    %1172 = vmatprep.subr.bf16.mxu0 0
    %1173 = vmatpush1.bf16.msra.mxu0 0
    %1174 = vmatprep.subr.bf16.mxu0 0
    %1175 = vmatpush1.bf16.msra.mxu0 0
    %1176 = vmatprep.subr.bf16.mxu0 0
    %1177 = vmatpush1.bf16.msra.mxu0 0
    %1178 = vmatprep.subr.bf16.mxu0 0
    %1179 = vmatpush1.bf16.msra.mxu0 0
    %1180 = vmatprep.subr.bf16.mxu0 0
    %1181 = vmatpush1.bf16.msra.mxu0 0
    %1182 = vmatprep.mubr.bf16.mxu0 0
    %1183 = vmatmul.mubr.bf16.gmra.mrb[0].mxu0 %v1127
    %v1184 = vpop.f32.mrb[0].mxu0
    %v1185 = vadd.f32 %v1079, %v1184
    %v1186 = vpop.f32.mrb[0].mxu0
    %v1187 = vadd.f32 %v1083, %v1186
    %v1188 = vpop.f32.mrb[0].mxu0
    %v1189 = vadd.f32 %v1079, %v1188
    %v1190 = vpop.f32.mrb[0].mxu0
    %v1191 = vadd.f32 %v1083, %v1190
    %1192 = vmatprep.mubr.bf16.mxu0 0
    %1193 = vmatmul.mubr.bf16.gmra.mrb[0].mxu0 %v1130
    %v1194 = vpop.f32.mrb[0].mxu0
    %v1195 = vadd.f32 %v1079, %v1194
    %v1196 = vpop.f32.mrb[0].mxu0
    %v1197 = vadd.f32 %v1083, %v1196
    %v1198 = vpop.f32.mrb[0].mxu0
    %v1199 = vadd.f32 %v1079, %v1198
    %v1200 = vpop.f32.mrb[0].mxu0
    %v1201 = vadd.f32 %v1083, %v1200
    %1202 = vmatprep.mubr.bf16.mxu0 0
    %1203 = vmatmul.mubr.bf16.gmra.mrb[0].mxu0 %v1133
    %v1204 = vpop.f32.mrb[0].mxu0
    %v1205 = vadd.f32 %v1079, %v1204
    %v1206 = vpop.f32.mrb[0].mxu0
    %v1207 = vadd.f32 %v1083, %v1206
    %v1208 = vpop.f32.mrb[0].mxu0
    %v1209 = vadd.f32 %v1079, %v1208
    %v1210 = vpop.f32.mrb[0].mxu0
    %v1211 = vadd.f32 %v1083, %v1210
    %1212 = vmatprep.mubr.bf16.mxu0 0
    %1213 = vmatmul.mubr.bf16.gmra.mrb[0].mxu0 %v1136
    %v1214 = vpop.f32.mrb[0].mxu0
    %v1215 = vadd.f32 %v1079, %v1214
    %v1216 = vpop.f32.mrb[0].mxu0
    %v1217 = vadd.f32 %v1083, %v1216
    %v1218 = vpop.f32.mrb[0].mxu0
    %v1219 = vadd.f32 %v1079, %v1218
    %v1220 = vpop.f32.mrb[0].mxu0
    %v1221 = vadd.f32 %v1083, %v1220
    %1222 = vmatprep.mubr.bf16.mxu0 0
    %1223 = vmatmul.mubr.bf16.gmra.mrb[0].mxu0 %v1139
    %v1224 = vpop.f32.mrb[0].mxu0
    %v1225 = vadd.f32 %v1079, %v1224
    %v1226 = vpop.f32.mrb[0].mxu0
    %v1227 = vadd.f32 %v1083, %v1226
    %v1228 = vpop.f32.mrb[0].mxu0
    %v1229 = vadd.f32 %v1079, %v1228
    %v1230 = vpop.f32.mrb[0].mxu0
    %v1231 = vadd.f32 %v1083, %v1230
    %1232 = vmatprep.mubr.bf16.mxu0 0
    %1233 = vmatmul.mubr.bf16.gmra.mrb[0].mxu0 %v1142
    %v1234 = vpop.f32.mrb[0].mxu0
    %v1235 = vadd.f32 %v1079, %v1234
    %v1236 = vpop.f32.mrb[0].mxu0
    %v1237 = vadd.f32 %v1083, %v1236
    %v1238 = vpop.f32.mrb[0].mxu0
    %v1239 = vadd.f32 %v1079, %v1238
    %v1240 = vpop.f32.mrb[0].mxu0
    %v1241 = vadd.f32 %v1083, %v1240
    %1242 = vmatprep.mubr.bf16.mxu0 0
    %1243 = vmatmul.mubr.bf16.gmra.mrb[0].mxu0 %v1145
    %v1244 = vpop.f32.mrb[0].mxu0
    %v1245 = vadd.f32 %v1079, %v1244
    %v1246 = vpop.f32.mrb[0].mxu0
    %v1247 = vadd.f32 %v1083, %v1246
    %v1248 = vpop.f32.mrb[0].mxu0
    %v1249 = vadd.f32 %v1079, %v1248
    %v1250 = vpop.f32.mrb[0].mxu0
    %v1251 = vadd.f32 %v1083, %v1250
    %1252 = vmatprep.mubr.bf16.mxu0 0
    %1253 = vmatmul.mubr.bf16.gmra.mrb[0].mxu0 %v1148
    %v1254 = vpop.f32.mrb[0].mxu0
    %v1255 = vadd.f32 %v1079, %v1254
    %v1256 = vpop.f32.mrb[0].mxu0
    %v1257 = vadd.f32 %v1083, %v1256
    %v1258 = vpop.f32.mrb[0].mxu0
    %v1259 = vadd.f32 %v1079, %v1258
    %v1260 = vpop.f32.mrb[0].mxu0
    %v1261 = vadd.f32 %v1083, %v1260
    %1262 = vdwg.mxu0
    %v1263 = vpack.c.bf16 %v1189, %v1185
    %v1264 = vpack.c.bf16 %v1191, %v1187
    %v1265 = vpack.c.bf16 %v1199, %v1195
    %v1266 = vpack.c.bf16 %v1201, %v1197
    %v1267 = vpack.c.bf16 %v1209, %v1205
    %v1268 = vpack.c.bf16 %v1211, %v1207
    %v1269 = vpack.c.bf16 %v1219, %v1215
    %v1270 = vpack.c.bf16 %v1221, %v1217
    %v1271 = vpack.c.bf16 %v1229, %v1225
    %v1272 = vpack.c.bf16 %v1231, %v1227
    %v1273 = vpack.c.bf16 %v1239, %v1235
    %v1274 = vpack.c.bf16 %v1241, %v1237
    %v1275 = vpack.c.bf16 %v1249, %v1245
    %v1276 = vpack.c.bf16 %v1251, %v1247
    %v1277 = vpack.c.bf16 %v1259, %v1255
    %v1278 = vpack.c.bf16 %v1261, %v1257
    %v1295 = vunpack.c.l.b16 %v1263
    %v1296 = vunpack.c.l.b16 %v1264
    %v1297 = vunpack.c.h.b16 %v1263
    %v1298 = vunpack.c.h.b16 %v1264
    %v1299 = vunpack.c.l.b16 %v1265
    %v1300 = vunpack.c.l.b16 %v1266
    %v1301 = vunpack.c.h.b16 %v1265
    %v1302 = vunpack.c.h.b16 %v1266
    %v1303 = vunpack.c.l.b16 %v1267
    %v1304 = vunpack.c.l.b16 %v1268
    %v1305 = vunpack.c.h.b16 %v1267
    %v1306 = vunpack.c.h.b16 %v1268
    %v1307 = vunpack.c.l.b16 %v1269
    %v1308 = vunpack.c.l.b16 %v1270
    %v1309 = vunpack.c.h.b16 %v1269
    %v1310 = vunpack.c.h.b16 %v1270
    %v1311 = vunpack.c.l.b16 %v1271
    %v1312 = vunpack.c.l.b16 %v1272
    %v1313 = vunpack.c.h.b16 %v1271
    %v1314 = vunpack.c.h.b16 %v1272
    %v1315 = vunpack.c.l.b16 %v1273
    %v1316 = vunpack.c.l.b16 %v1274
    %v1317 = vunpack.c.h.b16 %v1273
    %v1318 = vunpack.c.h.b16 %v1274
    %v1319 = vunpack.c.l.b16 %v1275
    %v1320 = vunpack.c.l.b16 %v1276
    %v1321 = vunpack.c.h.b16 %v1275
    %v1322 = vunpack.c.h.b16 %v1276
    %v1323 = vunpack.c.l.b16 %v1277
    %v1324 = vunpack.c.l.b16 %v1278
    %v1325 = vunpack.c.h.b16 %v1277
    %v1326 = vunpack.c.h.b16 %v1278
    %v1327 = vpack.c.b16 %v1296, %v1295
    %v1328 = vpack.c.b16 %v1298, %v1297
    %v1329 = vpack.c.b16 %v1300, %v1299
    %v1330 = vpack.c.b16 %v1302, %v1301
    %v1331 = vpack.c.b16 %v1304, %v1303
    %v1332 = vpack.c.b16 %v1306, %v1305
    %v1333 = vpack.c.b16 %v1308, %v1307
    %v1334 = vpack.c.b16 %v1310, %v1309
    %v1335 = vpack.c.b16 %v1312, %v1311
    %v1336 = vpack.c.b16 %v1314, %v1313
    %v1337 = vpack.c.b16 %v1316, %v1315
    %v1338 = vpack.c.b16 %v1318, %v1317
    %v1339 = vpack.c.b16 %v1320, %v1319
    %v1340 = vpack.c.b16 %v1322, %v1321
    %v1341 = vpack.c.b16 %v1324, %v1323
    %v1342 = vpack.c.b16 %v1326, %v1325
    %1359 = vst [vmem:[#allocation2] sm:$0xff] %v1327
    %1360 = vst [vmem:[#allocation2 + $0x8] sm:$0xff] %v1328
    %1361 = vst [vmem:[#allocation2 + $0x10] sm:$0xff] %v1329
    %1362 = vst [vmem:[#allocation2 + $0x18] sm:$0xff] %v1330
    %1363 = vst [vmem:[#allocation2 + $0x20] sm:$0xff] %v1331
    %1364 = vst [vmem:[#allocation2 + $0x28] sm:$0xff] %v1332
    %1365 = vst [vmem:[#allocation2 + $0x30] sm:$0xff] %v1333
    %1366 = vst [vmem:[#allocation2 + $0x38] sm:$0xff] %v1334
    %1367 = vst [vmem:[#allocation2 + $0x40] sm:$0xff] %v1335
    %1368 = vst [vmem:[#allocation2 + $0x48] sm:$0xff] %v1336
    %1369 = vst [vmem:[#allocation2 + $0x50] sm:$0xff] %v1337
    %1370 = vst [vmem:[#allocation2 + $0x58] sm:$0xff] %v1338
    %1371 = vst [vmem:[#allocation2 + $0x60] sm:$0xff] %v1339
    %1372 = vst [vmem:[#allocation2 + $0x68] sm:$0xff] %v1340
    %1373 = vst [vmem:[#allocation2 + $0x70] sm:$0xff] %v1341
    %1374 = vst [vmem:[#allocation2 + $0x78] sm:$0xff] %v1342
    %1391 = vrot.lane.b32.xlu0 %v873, 64
    %v1392 = vpop.permute.xlu0 %1391
    %1393 = vrot.lane.b32.xlu0 %v874, 64
    %v1394 = vpop.permute.xlu0 %1393
    %1395 = vrot.lane.b32.xlu0 %v875, 64
    %v1396 = vpop.permute.xlu0 %1395
    %1397 = vrot.lane.b32.xlu0 %v876, 64
    %v1398 = vpop.permute.xlu0 %1397
    %1399 = vrot.lane.b32.xlu0 %v877, 64
    %v1400 = vpop.permute.xlu0 %1399
    %1401 = vrot.lane.b32.xlu0 %v878, 64
    %v1402 = vpop.permute.xlu0 %1401
    %1403 = vrot.lane.b32.xlu0 %v879, 64
    %v1404 = vpop.permute.xlu0 %1403
    %1405 = vrot.lane.b32.xlu0 %v880, 64
    %v1406 = vpop.permute.xlu0 %1405
    %1407 = vrot.lane.b32.xlu0 %v881, 64
    %v1408 = vpop.permute.xlu0 %1407
    %1409 = vrot.lane.b32.xlu0 %v882, 64
    %v1410 = vpop.permute.xlu0 %1409
    %1411 = vrot.lane.b32.xlu0 %v883, 64
    %v1412 = vpop.permute.xlu0 %1411
    %1413 = vrot.lane.b32.xlu0 %v884, 64
    %v1414 = vpop.permute.xlu0 %1413
    %1415 = vrot.lane.b32.xlu0 %v885, 64
    %v1416 = vpop.permute.xlu0 %1415
    %1417 = vrot.lane.b32.xlu0 %v886, 64
    %v1418 = vpop.permute.xlu0 %1417
    %1419 = vrot.lane.b32.xlu0 %v887, 64
    %v1420 = vpop.permute.xlu0 %1419
    %1421 = vrot.lane.b32.xlu0 %v888, 64
    %v1422 = vpop.permute.xlu0 %1421
    %v1439 = vsel %vm623, %v683, %v1392
    %v1440 = vsel %vm623, %v686, %v1394
    %v1441 = vsel %vm623, %v691, %v1396
    %v1442 = vsel %vm623, %v694, %v1398
    %v1443 = vsel %vm623, %v699, %v1400
    %v1444 = vsel %vm623, %v702, %v1402
    %v1445 = vsel %vm623, %v707, %v1404
    %v1446 = vsel %vm623, %v710, %v1406
    %v1447 = vsel %vm623, %v715, %v1408
    %v1448 = vsel %vm623, %v718, %v1410
    %v1449 = vsel %vm623, %v723, %v1412
    %v1450 = vsel %vm623, %v726, %v1414
    %v1451 = vsel %vm623, %v731, %v1416
    %v1452 = vsel %vm623, %v734, %v1418
    %v1453 = vsel %vm623, %v739, %v1420
    %v1454 = vsel %vm623, %v742, %v1422
    %vm1455 = vcmask 785408
    %v1456 = vsel %vm1455, %v1439, 0.0
    %v1457 = vsel %vm1455, %v1440, 0.0
    %v1458 = vsel %vm1455, %v1441, 0.0
    %v1459 = vsel %vm1455, %v1442, 0.0
    %v1460 = vsel %vm1455, %v1443, 0.0
    %v1461 = vsel %vm1455, %v1444, 0.0
    %v1462 = vsel %vm1455, %v1445, 0.0
    %v1463 = vsel %vm1455, %v1446, 0.0
    %v1464 = vsel %vm1455, %v1447, 0.0
    %v1465 = vsel %vm1455, %v1448, 0.0
    %v1466 = vsel %vm1455, %v1449, 0.0
    %v1467 = vsel %vm1455, %v1450, 0.0
    %v1468 = vsel %vm1455, %v1451, 0.0
    %v1469 = vsel %vm1455, %v1452, 0.0
    %v1470 = vsel %vm1455, %v1453, 0.0
    %v1471 = vsel %vm1455, %v1454, 0.0
    %v1472 = vpack.c.bf16 %v1457, %v1456
    %v1473 = vpack.c.bf16 %v1459, %v1458
    %v1474 = vpack.c.bf16 %v1461, %v1460
    %v1475 = vpack.c.bf16 %v1463, %v1462
    %v1476 = vpack.c.bf16 %v1465, %v1464
    %v1477 = vpack.c.bf16 %v1467, %v1466
    %v1478 = vpack.c.bf16 %v1469, %v1468
    %v1479 = vpack.c.bf16 %v1471, %v1470
    %v1488 = vunpack.c.l.b16 %v1472
    %v1489 = vunpack.c.h.b16 %v1472
    %v1490 = vunpack.c.l.b16 %v1473
    %v1491 = vunpack.c.h.b16 %v1473
    %v1492 = vunpack.c.l.b16 %v1474
    %v1493 = vunpack.c.h.b16 %v1474
    %v1494 = vunpack.c.l.b16 %v1475
    %v1495 = vunpack.c.h.b16 %v1475
    %v1496 = vunpack.c.l.b16 %v1476
    %v1497 = vunpack.c.h.b16 %v1476
    %v1498 = vunpack.c.l.b16 %v1477
    %v1499 = vunpack.c.h.b16 %v1477
    %v1500 = vunpack.c.l.b16 %v1478
    %v1501 = vunpack.c.h.b16 %v1478
    %v1502 = vunpack.c.l.b16 %v1479
    %v1503 = vunpack.c.h.b16 %v1479
    %v1504 = vpack.c.b16 %v1488, %v1488
    %v1505 = vpack.c.b16 %v1489, %v1489
    %v1506 = vpack.c.b16 %v1490, %v1490
    %v1507 = vpack.c.b16 %v1491, %v1491
    %v1508 = vpack.c.b16 %v1492, %v1492
    %v1509 = vpack.c.b16 %v1493, %v1493
    %v1510 = vpack.c.b16 %v1494, %v1494
    %v1511 = vpack.c.b16 %v1495, %v1495
    %v1512 = vpack.c.b16 %v1496, %v1496
    %v1513 = vpack.c.b16 %v1497, %v1497
    %v1514 = vpack.c.b16 %v1498, %v1498
    %v1515 = vpack.c.b16 %v1499, %v1499
    %v1516 = vpack.c.b16 %v1500, %v1500
    %v1517 = vpack.c.b16 %v1501, %v1501
    %v1518 = vpack.c.b16 %v1502, %v1502
    %v1519 = vpack.c.b16 %v1503, %v1503
    %1536 = vst [vmem:[#allocation4] sm:$0xf] %v1504
    %1537 = vst [vmem:[#allocation4 + $0x4] sm:$0xf] %v1505
    %1538 = vst [vmem:[#allocation4 + $0x8] sm:$0xf] %v1506
    %1539 = vst [vmem:[#allocation4 + $0xc] sm:$0xf] %v1507
    %1540 = vst [vmem:[#allocation4 + $0x10] sm:$0xf] %v1508
    %1541 = vst [vmem:[#allocation4 + $0x14] sm:$0xf] %v1509
    %1542 = vst [vmem:[#allocation4 + $0x18] sm:$0xf] %v1510
    %1543 = vst [vmem:[#allocation4 + $0x1c] sm:$0xf] %v1511
    %1544 = vst [vmem:[#allocation4 + $0x20] sm:$0xf] %v1512
    %1545 = vst [vmem:[#allocation4 + $0x24] sm:$0xf] %v1513
    %1546 = vst [vmem:[#allocation4 + $0x28] sm:$0xf] %v1514
    %1547 = vst [vmem:[#allocation4 + $0x2c] sm:$0xf] %v1515
    %1548 = vst [vmem:[#allocation4 + $0x30] sm:$0xf] %v1516
    %1549 = vst [vmem:[#allocation4 + $0x34] sm:$0xf] %v1517
    %1550 = vst [vmem:[#allocation4 + $0x38] sm:$0xf] %v1518
    %1551 = vst [vmem:[#allocation4 + $0x3c] sm:$0xf] %v1519
    // Predicated region
    $region42: #{tpu_custom_call.1} parent=1 // pred_check
      _
    $region43: #{tpu_custom_call.1} parent=1 // pred_check_branch
      %1553 = sbr.rel (0) target = $region45
    $region44: #{tpu_custom_call.1} parent=1 // pred_region
      %s1555 = ssub.s32 2048, 2048
      %1556 = vsyncadd [#allocation3], %s1555
      %s1557 = sshll.u32 [#allocation2], 4
      %s1558 = int_to_ptr.vmem [resolvable:$true] %s1557
      %1563 = dma.vmem_to_hbm [thread:$0]  %s1558, 2048, %s10, [#allocation3], 128, 128, 8
    $region45: #{tpu_custom_call.1} parent=1 // pred_fallthru
      _
    // Predicated region
    $region46: #{tpu_custom_call.1} parent=1 // pred_check
      _
    $region47: #{tpu_custom_call.1} parent=1 // pred_check_branch
      %1565 = sbr.rel (0) target = $region49
    $region48: #{tpu_custom_call.1} parent=1 // pred_region
      %s1567 = ssub.s32 1024, 1024
      %1568 = vsyncadd [#allocation5], %s1567
      %s1569 = sshll.u32 [#allocation4], 4
      %s1570 = int_to_ptr.vmem [resolvable:$true] %s1569
      %1575 = dma.vmem_to_hbm [thread:$0]  %s1570, 1024, %s11, [#allocation5], 64, 64, 4
    $region49: #{tpu_custom_call.1} parent=1 // pred_fallthru
      _
    // Predicated region
    $region50: #{tpu_custom_call.1} parent=1 // pred_check
      _
    $region51: #{tpu_custom_call.1} parent=1 // pred_check_branch
      %1577 = sbr.rel (0) target = $region53
    $region52: #{tpu_custom_call.1} parent=1 // pred_region
      %1578 = dma.done [#allocation3], 2048
    $region53: #{tpu_custom_call.1} parent=1 // pred_fallthru
      _
    // Predicated region
    $region54: #{tpu_custom_call.1} parent=1 // pred_check
      _
    $region55: #{tpu_custom_call.1} parent=1 // pred_check_branch
      %1580 = sbr.rel (0) target = $region57
    $region56: #{tpu_custom_call.1} parent=1 // pred_region
      %1581 = dma.done [#allocation5], 1024
    $region57: #{tpu_custom_call.1} parent=1 // pred_fallthru
      _
    %1582 = vsyncpa [#allocation3], 1
    %1583 = vsyncpa [#allocation5], 1

</llo_original>
